<compile_context>
chip_gen: v6e
topology: v6e:2x2x1
jax: 0.10.0
libtpu: 0.0.40
codegen_flags: <defaults>
</compile_context>

<pallas_src>
import numpy as np
import jax
import jax.numpy as jnp
from jax import lax
from jax.experimental import pallas as pl
from jax.experimental.pallas import tpu as pltpu

KH, KW = 3, 5      # conv kernel size (3, 5)
PH, PW = 1, 2      # padding (1, 2) -> spatially "same"
LANE = 128
ROW_ALIGN = 16     # bf16 sublane packing -> keep per-level row offsets 16-aligned


def _round_up(x, m):
    return (x + m - 1) // m * m


# ---------------------------------------------------------------------------
# Pallas kernel: one grid step, static per-level matmuls over the packed rows.
# ---------------------------------------------------------------------------
def _make_textbox_kernel(level_rows):
    """level_rows: static tuple of (row_offset, padded_rows) per pyramid level."""
    def kernel(p_ref, w_ref, o_ref):
        # p_ref: (M_total, K_pad) bf16   packed im2col patches (+ ones column)
        # w_ref: (L, K_pad, N_pad) bf16  fused loc|quad|rot|conf weights (+ bias row)
        # o_ref: (M_total, N_pad) f32
        for li, (off, rows) in enumerate(level_rows):
            o_ref[pl.ds(off, rows), :] = jnp.dot(
                p_ref[pl.ds(off, rows), :], w_ref[li],
                preferred_element_type=jnp.float32)
    return kernel


def fused_textbox_matmul(p_all, w_stack, level_rows):
    """p_all: (M_total, K_pad) bf16; w_stack: (L, K_pad, N_pad) bf16 -> (M_total, N_pad) f32."""
    M, Kp = p_all.shape
    L, _, Np = w_stack.shape
    return pl.pallas_call(
        _make_textbox_kernel(level_rows),
        out_shape=jax.ShapeDtypeStruct((M, Np), jnp.float32),
        grid=(1,),
        in_specs=[
            pl.BlockSpec((M, Kp), lambda i: (0, 0)),
            pl.BlockSpec((L, Kp, Np), lambda i: (0, 0, 0)),
        ],
        out_specs=pl.BlockSpec((M, Np), lambda i: (0, 0)),
        compiler_params=pltpu.CompilerParams(
            dimension_semantics=("arbitrary",)),
    )(p_all, w_stack)


def _im2col_3x5(x):
    """(B, H, W, C) -> (B*H*W, KH*KW*C) patches for the (3,5) conv with padding (1,2)."""
    B, H, W, C = x.shape
    xp = jnp.pad(x, ((0, 0), (PH, PH), (PW, PW), (0, 0)))
    taps = []
    for kh in range(KH):               # (kh, kw, c) ordering matches w.reshape(K, Cout)
        for kw in range(KW):
            taps.append(lax.slice(xp, (0, kh, kw, 0), (B, kh + H, kw + W, C)))
    p = jnp.concatenate(taps, axis=-1)             # (B, H, W, KH*KW*C)
    return p.reshape(B * H * W, KH * KW * C)


# ---------------------------------------------------------------------------
# Module
# ---------------------------------------------------------------------------
class TextBoxPallas:
    """JAX/Pallas re-implementation of the PyTorch TextBox module."""

    def __init__(self, in_channels, mbox=(4, 6, 6, 6, 4, 4), key=None):
        if key is None:
            key = jax.random.PRNGKey(0)
        self.num_classes = 2
        self.mbox = tuple(mbox)
        self.in_channels = in_channels

        self.K0 = KH * KW * in_channels                       # real contraction depth
        self.K_pad = _round_up(self.K0 + 1, LANE)             # +1: ones column for bias
        self.couts = [nb * (4 + 8 + 5 + self.num_classes) for nb in self.mbox]
        self.N_pad = _round_up(max(self.couts), LANE)

        # Per-level, per-head conv weights (HWIO) and biases (uniform init like PyTorch).
        fan_in = in_channels * KH * KW
        bound = 1.0 / np.sqrt(fan_in)
        self.params = []  # per level: (list of head weights, list of head biases), f32
        for li, nb in enumerate(self.mbox):
            head_outs = [nb * 4, nb * 8, nb * 5, nb * self.num_classes]
            ws, bs = [], []
            for hi, co in enumerate(head_outs):
                kw_, kb_ = jax.random.split(jax.random.fold_in(key, li * 16 + hi))
                w = jax.random.uniform(kw_, (KH, KW, in_channels, co),
                                       jnp.float32, -bound, bound)
                bb = jax.random.uniform(kb_, (co,), jnp.float32, -bound, bound)
                ws.append(w)
                bs.append(bb)
            self.params.append((ws, bs))

        # Fused weight stack: heads concatenated along Cout, bias folded in as row K0,
        # zero-padded to (K_pad, N_pad), stored in bf16 (MXU-native, half the bytes).
        w_rows = []
        for (ws, bs), cout in zip(self.params, self.couts):
            w_cat = jnp.concatenate(ws, axis=-1)              # (KH, KW, C, cout)
            b_cat = jnp.concatenate(bs, axis=-1)              # (cout,)
            w_mat = w_cat.reshape(self.K0, cout)              # (K0, cout), kh-major
            w_mat = jnp.concatenate([w_mat, b_cat[None, :]], axis=0)   # bias row -> K0
            w_mat = jnp.pad(w_mat, ((0, self.K_pad - (self.K0 + 1)),
                                    (0, self.N_pad - cout)))
            w_rows.append(w_mat)
        self.w_stack = jnp.stack(w_rows).astype(jnp.bfloat16)  # (L, K_pad, N_pad)

        self._fwd = jax.jit(self._forward)

    # One jitted forward: im2col + single pallas_call + head split / reshapes.
    def _forward(self, feats, w_stack):
        assert len(feats) == len(self.mbox)
        B = feats[0].shape[0]

        blocks = []
        level_rows = []   # (row_offset, padded_rows)   -> consumed by the kernel (static)
        level_meta = []   # (row_offset, real_rows, H*W) -> for the head split
        off = 0
        for x in feats:
            _, H, W, _ = x.shape
            p = _im2col_3x5(x.astype(jnp.bfloat16))            # (B*H*W, K0) bf16
            m = p.shape[0]
            m_pad = _round_up(m, ROW_ALIGN)
            ones = jnp.ones((m, 1), jnp.bfloat16)              # bias column
            p = jnp.concatenate([p, ones], axis=-1)            # (m, K0+1)
            p = jnp.pad(p, ((0, m_pad - m),
                            (0, self.K_pad - (self.K0 + 1))))
            blocks.append(p)
            level_rows.append((off, m_pad))
            level_meta.append((off, m, H * W))
            off += m_pad
        p_all = jnp.concatenate(blocks, axis=0)                # (M_total, K_pad) bf16

        y = fused_textbox_matmul(p_all, w_stack, tuple(level_rows))  # (M_total, N_pad) f32

        locs, quads, rots, confs = [], [], [], []
        for (roff, m, hw), nb, cout in zip(level_meta, self.mbox, self.couts):
            yl = y[roff:roff + m, :cout].reshape(B, hw, cout)  # static slices
            s0, s1, s2 = nb * 4, nb * 12, nb * 17
            locs.append(yl[:, :, :s0].reshape(B, -1))
            quads.append(yl[:, :, s0:s1].reshape(B, -1))
            rots.append(yl[:, :, s1:s2].reshape(B, -1))
            confs.append(yl[:, :, s2:].reshape(B, -1))

        loc = jnp.concatenate(locs, axis=1).reshape(B, -1, 4)
        quad = jnp.concatenate(quads, axis=1).reshape(B, -1, 8)
        rot = jnp.concatenate(rots, axis=1).reshape(B, -1, 5)
        conf = jnp.concatenate(confs, axis=1).reshape(B, -1, self.num_classes)
        return jnp.concatenate([loc, quad, rot], axis=2), conf

    def __call__(self, feature_pyramids):
        return self._fwd(tuple(feature_pyramids), self.w_stack)


# ---------------------------------------------------------------------------
# Pure-JAX reference (per-head f32 lax convs) mirroring the PyTorch forward.
# ---------------------------------------------------------------------------
def _reference_forward(model, feature_pyramids):
    dn = ('NHWC', 'HWIO', 'NHWC')
    pad = [(PH, PH), (PW, PW)]
    locs, quads, rots, confs = [], [], [], []
    for x, (ws, bs) in zip(feature_pyramids, model.params):
        B = x.shape[0]
        outs = []
        for w, b in zip(ws, bs):
            y = lax.conv_general_dilated(x, w, (1, 1), pad, dimension_numbers=dn,
                                         precision=lax.Precision.HIGHEST)
            outs.append(y + b[None, None, None, :])
        locs.append(outs[0].reshape(B, -1))
        quads.append(outs[1].reshape(B, -1))
        rots.append(outs[2].reshape(B, -1))
        confs.append(outs[3].reshape(B, -1))
    B = feature_pyramids[0].shape[0]
    loc = jnp.concatenate(locs, 1).reshape(B, -1, 4)
    quad = jnp.concatenate(quads, 1).reshape(B, -1, 8)
    rot = jnp.concatenate(rots, 1).reshape(B, -1, 5)
    conf = jnp.concatenate(confs, 1).reshape(B, -1, model.num_classes)
    return jnp.concatenate([loc, quad, rot], axis=2), conf


if __name__ == "__main__":
    key = jax.random.PRNGKey(0)
    B = 2
    in_channels = 8
    mbox = (4, 6, 6, 6, 4, 4)
    spatial = [(16, 16), (8, 8), (8, 8), (4, 4), (4, 4), (2, 2)]

    # Deterministic feature pyramid (NHWC).
    feats = []
    for li, (h, w) in enumerate(spatial):
        k = jax.random.fold_in(key, 1000 + li)
        feats.append(jax.random.normal(k, (B, h, w, in_channels), jnp.float32))

    model = TextBoxPallas(in_channels, mbox=mbox, key=jax.random.fold_in(key, 7))

    boxes, conf = model(feats)
    boxes = jax.block_until_ready(boxes)
    conf = jax.block_until_ready(conf)

    # Sanity: shapes match PyTorch semantics (B, total_anchors, 17) and (B, total_anchors, 2).
    total_anchors = sum(h * w * nb for (h, w), nb in zip(spatial, mbox))
    assert boxes.shape == (B, total_anchors, 17), boxes.shape
    assert conf.shape == (B, total_anchors, 2), conf.shape

    # Numerical check against a pure-JAX f32 reference (bf16 operands -> looser tolerance).
    ref_boxes, ref_conf = _reference_forward(model, feats)
    np.testing.assert_allclose(np.asarray(boxes), np.asarray(ref_boxes),
                               rtol=2e-2, atol=2e-2)
    np.testing.assert_allclose(np.asarray(conf), np.asarray(ref_conf),
                               rtol=2e-2, atol=2e-2)

    print("KERNEL_OK")
</pallas_src>

<mosaic_0001>
module attributes {stable_mosaic.version = 11 : i64} {
  func.func @kernel(%arg0: i32, %arg1: memref<848x128xbf16, #tpu.memory_space<vmem>>, %arg2: memref<6x128x128xbf16, #tpu.memory_space<vmem>>, %arg3: memref<848x128xf32, #tpu.memory_space<vmem>>) attributes {dimension_semantics = [#tpu.dimension_semantics<arbitrary>], iteration_bounds = array<i64: 1>, scalar_prefetch = 0 : i64, scratch_operands = 0 : i64, tpu.core_type = #tpu.core_type<tc>, window_params = [{pipeline_mode = #tpu.pipeline_mode<synchronous>, transform_indices = @transform_0, window_bounds = array<i64: 848, 128>}, {pipeline_mode = #tpu.pipeline_mode<synchronous>, transform_indices = @transform_1, window_bounds = array<i64: 6, 128, 128>}, {pipeline_mode = #tpu.pipeline_mode<synchronous>, transform_indices = @transform_2, window_bounds = array<i64: 848, 128>}]} {
    %c0 = arith.constant 0 : index
    %c0_0 = arith.constant 0 : index
    %0 = vector.load %arg1[%c0, %c0_0] : memref<848x128xbf16, #tpu.memory_space<vmem>>, vector<512x128xbf16>
    %c0_1 = arith.constant 0 : index
    %c0_2 = arith.constant 0 : index
    %c0_3 = arith.constant 0 : index
    %1 = vector.load %arg2[%c0_1, %c0_2, %c0_3] : memref<6x128x128xbf16, #tpu.memory_space<vmem>>, vector<1x128x128xbf16>
    %2 = vector.shape_cast %1 : vector<1x128x128xbf16> to vector<128x128xbf16>
    %cst = arith.constant dense<0.000000e+00> : vector<512x128xf32>
    %3 = tpu.matmul %0, %2, %cst {dimension_numbers = #tpu.dot_dimension_numbers<[1], [0], [0], [1], [0, 0, 1, 1], [], []>} : vector<512x128xbf16>, vector<128x128xbf16>, vector<512x128xf32> -> vector<512x128xf32>
    %c0_4 = arith.constant 0 : index
    %c0_5 = arith.constant 0 : index
    %4 = vector.load %arg3[%c0_4, %c0_5] : memref<848x128xf32, #tpu.memory_space<vmem>>, vector<512x128xf32>
    tpu.vector_store %arg3[%c0_4, %c0_5], %3 {strides = array<i32>} : memref<848x128xf32, #tpu.memory_space<vmem>>, vector<512x128xf32>,
    %c512 = arith.constant 512 : index
    %c0_6 = arith.constant 0 : index
    %5 = vector.load %arg1[%c512, %c0_6] : memref<848x128xbf16, #tpu.memory_space<vmem>>, vector<128x128xbf16>
    %c1 = arith.constant 1 : index
    %c0_7 = arith.constant 0 : index
    %c0_8 = arith.constant 0 : index
    %6 = vector.load %arg2[%c1, %c0_7, %c0_8] : memref<6x128x128xbf16, #tpu.memory_space<vmem>>, vector<1x128x128xbf16>
    %7 = vector.shape_cast %6 : vector<1x128x128xbf16> to vector<128x128xbf16>
    %cst_9 = arith.constant dense<0.000000e+00> : vector<128x128xf32>
    %8 = tpu.matmul %5, %7, %cst_9 {dimension_numbers = #tpu.dot_dimension_numbers<[1], [0], [0], [1], [0, 0, 1, 1], [], []>} : vector<128x128xbf16>, vector<128x128xbf16>, vector<128x128xf32> -> vector<128x128xf32>
    %c512_10 = arith.constant 512 : index
    %c0_11 = arith.constant 0 : index
    %9 = vector.load %arg3[%c512_10, %c0_11] : memref<848x128xf32, #tpu.memory_space<vmem>>, vector<128x128xf32>
    tpu.vector_store %arg3[%c512_10, %c0_11], %8 {strides = array<i32>} : memref<848x128xf32, #tpu.memory_space<vmem>>, vector<128x128xf32>,
    %c640 = arith.constant 640 : index
    %c0_12 = arith.constant 0 : index
    %10 = vector.load %arg1[%c640, %c0_12] : memref<848x128xbf16, #tpu.memory_space<vmem>>, vector<128x128xbf16>
    %c2 = arith.constant 2 : index
    %c0_13 = arith.constant 0 : index
    %c0_14 = arith.constant 0 : index
    %11 = vector.load %arg2[%c2, %c0_13, %c0_14] : memref<6x128x128xbf16, #tpu.memory_space<vmem>>, vector<1x128x128xbf16>
    %12 = vector.shape_cast %11 : vector<1x128x128xbf16> to vector<128x128xbf16>
    %cst_15 = arith.constant dense<0.000000e+00> : vector<128x128xf32>
    %13 = tpu.matmul %10, %12, %cst_15 {dimension_numbers = #tpu.dot_dimension_numbers<[1], [0], [0], [1], [0, 0, 1, 1], [], []>} : vector<128x128xbf16>, vector<128x128xbf16>, vector<128x128xf32> -> vector<128x128xf32>
    %c640_16 = arith.constant 640 : index
    %c0_17 = arith.constant 0 : index
    %14 = vector.load %arg3[%c640_16, %c0_17] : memref<848x128xf32, #tpu.memory_space<vmem>>, vector<128x128xf32>
    tpu.vector_store %arg3[%c640_16, %c0_17], %13 {strides = array<i32>} : memref<848x128xf32, #tpu.memory_space<vmem>>, vector<128x128xf32>,
    %c768 = arith.constant 768 : index
    %c0_18 = arith.constant 0 : index
    %15 = vector.load %arg1[%c768, %c0_18] : memref<848x128xbf16, #tpu.memory_space<vmem>>, vector<32x128xbf16>
    %c3 = arith.constant 3 : index
    %c0_19 = arith.constant 0 : index
    %c0_20 = arith.constant 0 : index
    %16 = vector.load %arg2[%c3, %c0_19, %c0_20] : memref<6x128x128xbf16, #tpu.memory_space<vmem>>, vector<1x128x128xbf16>
    %17 = vector.shape_cast %16 : vector<1x128x128xbf16> to vector<128x128xbf16>
    %cst_21 = arith.constant dense<0.000000e+00> : vector<32x128xf32>
    %18 = tpu.matmul %15, %17, %cst_21 {dimension_numbers = #tpu.dot_dimension_numbers<[1], [0], [0], [1], [0, 0, 1, 1], [], []>} : vector<32x128xbf16>, vector<128x128xbf16>, vector<32x128xf32> -> vector<32x128xf32>
    %c768_22 = arith.constant 768 : index
    %c0_23 = arith.constant 0 : index
    %19 = vector.load %arg3[%c768_22, %c0_23] : memref<848x128xf32, #tpu.memory_space<vmem>>, vector<32x128xf32>
    tpu.vector_store %arg3[%c768_22, %c0_23], %18 {strides = array<i32>} : memref<848x128xf32, #tpu.memory_space<vmem>>, vector<32x128xf32>,
    %c800 = arith.constant 800 : index
    %c0_24 = arith.constant 0 : index
    %20 = vector.load %arg1[%c800, %c0_24] : memref<848x128xbf16, #tpu.memory_space<vmem>>, vector<32x128xbf16>
    %c4 = arith.constant 4 : index
    %c0_25 = arith.constant 0 : index
    %c0_26 = arith.constant 0 : index
    %21 = vector.load %arg2[%c4, %c0_25, %c0_26] : memref<6x128x128xbf16, #tpu.memory_space<vmem>>, vector<1x128x128xbf16>
    %22 = vector.shape_cast %21 : vector<1x128x128xbf16> to vector<128x128xbf16>
    %cst_27 = arith.constant dense<0.000000e+00> : vector<32x128xf32>
    %23 = tpu.matmul %20, %22, %cst_27 {dimension_numbers = #tpu.dot_dimension_numbers<[1], [0], [0], [1], [0, 0, 1, 1], [], []>} : vector<32x128xbf16>, vector<128x128xbf16>, vector<32x128xf32> -> vector<32x128xf32>
    %c800_28 = arith.constant 800 : index
    %c0_29 = arith.constant 0 : index
    %24 = vector.load %arg3[%c800_28, %c0_29] : memref<848x128xf32, #tpu.memory_space<vmem>>, vector<32x128xf32>
    tpu.vector_store %arg3[%c800_28, %c0_29], %23 {strides = array<i32>} : memref<848x128xf32, #tpu.memory_space<vmem>>, vector<32x128xf32>,
    %c832 = arith.constant 832 : index
    %c0_30 = arith.constant 0 : index
    %25 = vector.load %arg1[%c832, %c0_30] : memref<848x128xbf16, #tpu.memory_space<vmem>>, vector<16x128xbf16>
    %c5 = arith.constant 5 : index
    %c0_31 = arith.constant 0 : index
    %c0_32 = arith.constant 0 : index
    %26 = vector.load %arg2[%c5, %c0_31, %c0_32] : memref<6x128x128xbf16, #tpu.memory_space<vmem>>, vector<1x128x128xbf16>
    %27 = vector.shape_cast %26 : vector<1x128x128xbf16> to vector<128x128xbf16>
    %cst_33 = arith.constant dense<0.000000e+00> : vector<16x128xf32>
    %28 = tpu.matmul %25, %27, %cst_33 {dimension_numbers = #tpu.dot_dimension_numbers<[1], [0], [0], [1], [0, 0, 1, 1], [], []>} : vector<16x128xbf16>, vector<128x128xbf16>, vector<16x128xf32> -> vector<16x128xf32>
    %c832_34 = arith.constant 832 : index
    %c0_35 = arith.constant 0 : index
    %29 = vector.load %arg3[%c832_34, %c0_35] : memref<848x128xf32, #tpu.memory_space<vmem>>, vector<16x128xf32>
    tpu.vector_store %arg3[%c832_34, %c0_35], %28 {strides = array<i32>} : memref<848x128xf32, #tpu.memory_space<vmem>>, vector<16x128xf32>,
    return
  }
  func.func @transform_0(%arg0: i32) -> (i32, i32) {
    %c0_i32 = arith.constant 0 : i32
    %c0_i32_0 = arith.constant 0 : i32
    %c0_i32_1 = arith.constant 0 : i32
    return %c0_i32, %c0_i32_0 : i32, i32
  }
  func.func @transform_1(%arg0: i32) -> (i32, i32, i32) {
    %c0_i32 = arith.constant 0 : i32
    %c0_i32_0 = arith.constant 0 : i32
    %c0_i32_1 = arith.constant 0 : i32
    %c0_i32_2 = arith.constant 0 : i32
    return %c0_i32, %c0_i32_0, %c0_i32_1 : i32, i32, i32
  }
  func.func @transform_2(%arg0: i32) -> (i32, i32) {
    %c0_i32 = arith.constant 0 : i32
    %c0_i32_0 = arith.constant 0 : i32
    %c0_i32_1 = arith.constant 0 : i32
    return %c0_i32, %c0_i32_0 : i32, i32
  }
}

</mosaic_0001>

<llo_original>
// kernel: _forward.1
$region0: #{_forward.1}
  #allocation0 [shape = 'u32[]', space=smem, size = 0x4, offset = 0x4, fixed_abs, tag = 'smem constant byte address 0x4 - core index']
  #allocation1 [shape = 'u32[144,128]{1,0:T(1,128)}', space=vmem, size = 0x12000, scoped, tag = 'internal scratch']
  %s0 = inlined_call_operand.vmem [shape: bf16[848,128], index: 0, kind: input, shape index: {}]
  %s1 = inlined_call_operand.vmem [shape: bf16[6,128,128], index: 1, kind: input, shape index: {}]
  %s2 = inlined_call_operand.vmem [shape: f32[848,128], index: 2, kind: output, shape index: {}]
  %s3 = sld [smem:[#allocation0]]
  $region18: #{_forward.1} parent=0
    _
  %s5 = ssub.s32 1, %s3
  %s6 = scalar_select 0, %s5, %s3
  // Predicated region
  $region2: #{_forward.1} parent=0 // pred_check
    _
  $region3: #{_forward.1} parent=0 // pred_check_branch
    %8 = sbr.rel (0) target = $region5
  $region4: #{_forward.1} parent=0 // pred_region
    _
  $region5: #{_forward.1} parent=0 // pred_fallthru
    _
  // Predicated region
  $region6: #{_forward.1} parent=0 // pred_check
    _
  $region7: #{_forward.1} parent=0 // pred_check_branch
    %10 = sbr.rel (0) target = $region9
  $region8: #{_forward.1} parent=0 // pred_region
    _
  $region9: #{_forward.1} parent=0 // pred_fallthru
    _
  %v12 = vld [vmem:[%s0] sm:$0xf]
  %v13 = vld [vmem:[%s0 + $0x4] sm:$0xf]
  %v14 = vld [vmem:[%s0 + $0x8] sm:$0xf]
  %v15 = vld [vmem:[%s0 + $0xc] sm:$0xf]
  %v16 = vld [vmem:[%s0 + $0x10] sm:$0xf]
  %v17 = vld [vmem:[%s0 + $0x14] sm:$0xf]
  %v18 = vld [vmem:[%s0 + $0x18] sm:$0xf]
  %v19 = vld [vmem:[%s0 + $0x1c] sm:$0xf]
  %v20 = vld [vmem:[%s0 + $0x20] sm:$0xf]
  %v21 = vld [vmem:[%s0 + $0x24] sm:$0xf]
  %v22 = vld [vmem:[%s0 + $0x28] sm:$0xf]
  %v23 = vld [vmem:[%s0 + $0x2c] sm:$0xf]
  %v24 = vld [vmem:[%s0 + $0x30] sm:$0xf]
  %v25 = vld [vmem:[%s0 + $0x34] sm:$0xf]
  %v26 = vld [vmem:[%s0 + $0x38] sm:$0xf]
  %v27 = vld [vmem:[%s0 + $0x3c] sm:$0xf]
  %v28 = vld [vmem:[%s0 + $0x40] sm:$0xf]
  %v29 = vld [vmem:[%s0 + $0x44] sm:$0xf]
  %v30 = vld [vmem:[%s0 + $0x48] sm:$0xf]
  %v31 = vld [vmem:[%s0 + $0x4c] sm:$0xf]
  %v32 = vld [vmem:[%s0 + $0x50] sm:$0xf]
  %v33 = vld [vmem:[%s0 + $0x54] sm:$0xf]
  %v34 = vld [vmem:[%s0 + $0x58] sm:$0xf]
  %v35 = vld [vmem:[%s0 + $0x5c] sm:$0xf]
  %v36 = vld [vmem:[%s0 + $0x60] sm:$0xf]
  %v37 = vld [vmem:[%s0 + $0x64] sm:$0xf]
  %v38 = vld [vmem:[%s0 + $0x68] sm:$0xf]
  %v39 = vld [vmem:[%s0 + $0x6c] sm:$0xf]
  %v40 = vld [vmem:[%s0 + $0x70] sm:$0xf]
  %v41 = vld [vmem:[%s0 + $0x74] sm:$0xf]
  %v42 = vld [vmem:[%s0 + $0x78] sm:$0xf]
  %v43 = vld [vmem:[%s0 + $0x7c] sm:$0xf]
  %v44 = vld [vmem:[%s0 + $0x80] sm:$0xf]
  %v45 = vld [vmem:[%s0 + $0x84] sm:$0xf]
  %v46 = vld [vmem:[%s0 + $0x88] sm:$0xf]
  %v47 = vld [vmem:[%s0 + $0x8c] sm:$0xf]
  %v48 = vld [vmem:[%s0 + $0x90] sm:$0xf]
  %v49 = vld [vmem:[%s0 + $0x94] sm:$0xf]
  %v50 = vld [vmem:[%s0 + $0x98] sm:$0xf]
  %v51 = vld [vmem:[%s0 + $0x9c] sm:$0xf]
  %v52 = vld [vmem:[%s0 + $0xa0] sm:$0xf]
  %v53 = vld [vmem:[%s0 + $0xa4] sm:$0xf]
  %v54 = vld [vmem:[%s0 + $0xa8] sm:$0xf]
  %v55 = vld [vmem:[%s0 + $0xac] sm:$0xf]
  %v56 = vld [vmem:[%s0 + $0xb0] sm:$0xf]
  %v57 = vld [vmem:[%s0 + $0xb4] sm:$0xf]
  %v58 = vld [vmem:[%s0 + $0xb8] sm:$0xf]
  %v59 = vld [vmem:[%s0 + $0xbc] sm:$0xf]
  %v60 = vld [vmem:[%s0 + $0xc0] sm:$0xf]
  %v61 = vld [vmem:[%s0 + $0xc4] sm:$0xf]
  %v62 = vld [vmem:[%s0 + $0xc8] sm:$0xf]
  %v63 = vld [vmem:[%s0 + $0xcc] sm:$0xf]
  %v64 = vld [vmem:[%s0 + $0xd0] sm:$0xf]
  %v65 = vld [vmem:[%s0 + $0xd4] sm:$0xf]
  %v66 = vld [vmem:[%s0 + $0xd8] sm:$0xf]
  %v67 = vld [vmem:[%s0 + $0xdc] sm:$0xf]
  %v68 = vld [vmem:[%s0 + $0xe0] sm:$0xf]
  %v69 = vld [vmem:[%s0 + $0xe4] sm:$0xf]
  %v70 = vld [vmem:[%s0 + $0xe8] sm:$0xf]
  %v71 = vld [vmem:[%s0 + $0xec] sm:$0xf]
  %v72 = vld [vmem:[%s0 + $0xf0] sm:$0xf]
  %v73 = vld [vmem:[%s0 + $0xf4] sm:$0xf]
  %v74 = vld [vmem:[%s0 + $0xf8] sm:$0xf]
  %v75 = vld [vmem:[%s0 + $0xfc] sm:$0xf]
  %v76 = vld [vmem:[%s1] sm:$0xf]
  %v77 = vld [vmem:[%s1 + $0x4] sm:$0xf]
  %v78 = vld [vmem:[%s1 + $0x8] sm:$0xf]
  %v79 = vld [vmem:[%s1 + $0xc] sm:$0xf]
  %v80 = vld [vmem:[%s1 + $0x10] sm:$0xf]
  %v81 = vld [vmem:[%s1 + $0x14] sm:$0xf]
  %v82 = vld [vmem:[%s1 + $0x18] sm:$0xf]
  %v83 = vld [vmem:[%s1 + $0x1c] sm:$0xf]
  %v84 = vld [vmem:[%s1 + $0x20] sm:$0xf]
  %v85 = vld [vmem:[%s1 + $0x24] sm:$0xf]
  %v86 = vld [vmem:[%s1 + $0x28] sm:$0xf]
  %v87 = vld [vmem:[%s1 + $0x2c] sm:$0xf]
  %v88 = vld [vmem:[%s1 + $0x30] sm:$0xf]
  %v89 = vld [vmem:[%s1 + $0x34] sm:$0xf]
  %v90 = vld [vmem:[%s1 + $0x38] sm:$0xf]
  %v91 = vld [vmem:[%s1 + $0x3c] sm:$0xf]
  %v156 = vunpack.c.l.b16 %v12
  %v157 = vunpack.c.l.b16 %v13
  %v158 = vunpack.c.l.b16 %v14
  %v159 = vunpack.c.l.b16 %v15
  %v160 = vunpack.c.l.b16 %v16
  %v161 = vunpack.c.l.b16 %v17
  %v162 = vunpack.c.l.b16 %v18
  %v163 = vunpack.c.l.b16 %v19
  %v164 = vunpack.c.l.b16 %v20
  %v165 = vunpack.c.l.b16 %v21
  %v166 = vunpack.c.l.b16 %v22
  %v167 = vunpack.c.l.b16 %v23
  %v168 = vunpack.c.l.b16 %v24
  %v169 = vunpack.c.l.b16 %v25
  %v170 = vunpack.c.l.b16 %v26
  %v171 = vunpack.c.l.b16 %v27
  %v172 = vunpack.c.l.b16 %v28
  %v173 = vunpack.c.l.b16 %v29
  %v174 = vunpack.c.l.b16 %v30
  %v175 = vunpack.c.l.b16 %v31
  %v176 = vunpack.c.l.b16 %v32
  %v177 = vunpack.c.l.b16 %v33
  %v178 = vunpack.c.l.b16 %v34
  %v179 = vunpack.c.l.b16 %v35
  %v180 = vunpack.c.l.b16 %v36
  %v181 = vunpack.c.l.b16 %v37
  %v182 = vunpack.c.l.b16 %v38
  %v183 = vunpack.c.l.b16 %v39
  %v184 = vunpack.c.l.b16 %v40
  %v185 = vunpack.c.l.b16 %v41
  %v186 = vunpack.c.l.b16 %v42
  %v187 = vunpack.c.l.b16 %v43
  %v188 = vunpack.c.l.b16 %v44
  %v189 = vunpack.c.l.b16 %v45
  %v190 = vunpack.c.l.b16 %v46
  %v191 = vunpack.c.l.b16 %v47
  %v192 = vunpack.c.l.b16 %v48
  %v193 = vunpack.c.l.b16 %v49
  %v194 = vunpack.c.l.b16 %v50
  %v195 = vunpack.c.l.b16 %v51
  %v196 = vunpack.c.l.b16 %v52
  %v197 = vunpack.c.l.b16 %v53
  %v198 = vunpack.c.l.b16 %v54
  %v199 = vunpack.c.l.b16 %v55
  %v200 = vunpack.c.l.b16 %v56
  %v201 = vunpack.c.l.b16 %v57
  %v202 = vunpack.c.l.b16 %v58
  %v203 = vunpack.c.l.b16 %v59
  %v204 = vunpack.c.l.b16 %v60
  %v205 = vunpack.c.l.b16 %v61
  %v206 = vunpack.c.l.b16 %v62
  %v207 = vunpack.c.l.b16 %v63
  %v208 = vunpack.c.l.b16 %v64
  %v209 = vunpack.c.l.b16 %v65
  %v210 = vunpack.c.l.b16 %v66
  %v211 = vunpack.c.l.b16 %v67
  %v212 = vunpack.c.l.b16 %v68
  %v213 = vunpack.c.l.b16 %v69
  %v214 = vunpack.c.l.b16 %v70
  %v215 = vunpack.c.l.b16 %v71
  %v216 = vunpack.c.l.b16 %v72
  %v217 = vunpack.c.l.b16 %v73
  %v218 = vunpack.c.l.b16 %v74
  %v219 = vunpack.c.l.b16 %v75
  %v220 = vpack.c.b16 %v157, %v156
  %v221 = vpack.c.b16 %v159, %v158
  %v222 = vpack.c.b16 %v161, %v160
  %v223 = vpack.c.b16 %v163, %v162
  %v224 = vpack.c.b16 %v165, %v164
  %v225 = vpack.c.b16 %v167, %v166
  %v226 = vpack.c.b16 %v169, %v168
  %v227 = vpack.c.b16 %v171, %v170
  %v228 = vpack.c.b16 %v173, %v172
  %v229 = vpack.c.b16 %v175, %v174
  %v230 = vpack.c.b16 %v177, %v176
  %v231 = vpack.c.b16 %v179, %v178
  %v232 = vpack.c.b16 %v181, %v180
  %v233 = vpack.c.b16 %v183, %v182
  %v234 = vpack.c.b16 %v185, %v184
  %v235 = vpack.c.b16 %v187, %v186
  %v236 = vpack.c.b16 %v189, %v188
  %v237 = vpack.c.b16 %v191, %v190
  %v238 = vpack.c.b16 %v193, %v192
  %v239 = vpack.c.b16 %v195, %v194
  %v240 = vpack.c.b16 %v197, %v196
  %v241 = vpack.c.b16 %v199, %v198
  %v242 = vpack.c.b16 %v201, %v200
  %v243 = vpack.c.b16 %v203, %v202
  %v244 = vpack.c.b16 %v205, %v204
  %v245 = vpack.c.b16 %v207, %v206
  %v246 = vpack.c.b16 %v209, %v208
  %v247 = vpack.c.b16 %v211, %v210
  %v248 = vpack.c.b16 %v213, %v212
  %v249 = vpack.c.b16 %v215, %v214
  %v250 = vpack.c.b16 %v217, %v216
  %v251 = vpack.c.b16 %v219, %v218
  %v300 = vunpack.c.l.b16 %v76
  %v301 = vunpack.c.l.b16 %v77
  %v302 = vunpack.c.l.b16 %v78
  %v303 = vunpack.c.l.b16 %v79
  %v304 = vunpack.c.l.b16 %v80
  %v305 = vunpack.c.l.b16 %v81
  %v306 = vunpack.c.l.b16 %v82
  %v307 = vunpack.c.l.b16 %v83
  %v308 = vunpack.c.l.b16 %v84
  %v309 = vunpack.c.l.b16 %v85
  %v310 = vunpack.c.l.b16 %v86
  %v311 = vunpack.c.l.b16 %v87
  %v312 = vunpack.c.l.b16 %v88
  %v313 = vunpack.c.l.b16 %v89
  %v314 = vunpack.c.l.b16 %v90
  %v315 = vunpack.c.l.b16 %v91
  %v316 = vpack.c.b16 %v301, %v300
  %v317 = vpack.c.b16 %v303, %v302
  %v318 = vpack.c.b16 %v305, %v304
  %v319 = vpack.c.b16 %v307, %v306
  %v320 = vpack.c.b16 %v309, %v308
  %v321 = vpack.c.b16 %v311, %v310
  %v322 = vpack.c.b16 %v313, %v312
  %v323 = vpack.c.b16 %v315, %v314
  %332 = vmatprep.subr.bf16.mxu0 0
  %333 = vmatpush1.bf16.msra.mxu0 %v323
  %334 = vmatprep.subr.bf16.mxu0 0
  %335 = vmatpush1.bf16.msra.mxu0 %v322
  %336 = vmatprep.subr.bf16.mxu0 0
  %337 = vmatpush1.bf16.msra.mxu0 %v321
  %338 = vmatprep.subr.bf16.mxu0 0
  %339 = vmatpush1.bf16.msra.mxu0 %v320
  %340 = vmatprep.subr.bf16.mxu0 0
  %341 = vmatpush1.bf16.msra.mxu0 %v319
  %342 = vmatprep.subr.bf16.mxu0 0
  %343 = vmatpush1.bf16.msra.mxu0 %v318
  %344 = vmatprep.subr.bf16.mxu0 0
  %345 = vmatpush1.bf16.msra.mxu0 %v317
  %346 = vmatprep.subr.bf16.mxu0 0
  %347 = vmatpush1.bf16.msra.mxu0 %v316
  %348 = vmatprep.subr.bf16.mxu0 0
  %349 = vmatpush2.bf16.msra.mxu0 0
  %350 = vmatprep.subr.bf16.mxu0 0
  %351 = vmatpush2.bf16.msra.mxu0 0
  %352 = vmatprep.subr.bf16.mxu0 0
  %353 = vmatpush2.bf16.msra.mxu0 0
  %354 = vmatprep.subr.bf16.mxu0 0
  %355 = vmatpush2.bf16.msra.mxu0 0
  %356 = vmatprep.subr.bf16.mxu0 0
  %357 = vmatpush2.bf16.msra.mxu0 0
  %358 = vmatprep.subr.bf16.mxu0 0
  %359 = vmatpush2.bf16.msra.mxu0 0
  %360 = vmatprep.subr.bf16.mxu0 0
  %361 = vmatpush2.bf16.msra.mxu0 0
  %362 = vmatprep.subr.bf16.mxu0 0
  %363 = vmatpush2.bf16.msra.mxu0 0
  %364 = vmatprep.mubr.bf16.mxu0 0
  %365 = vmatmul.mubr.bf16.gmra.mxu0 %v220
  %v366 = vpop.f32.mrf.mxu0
  %v367 = vadd.f32 0.0, %v366
  %v368 = vpop.f32.mrf.mxu0
  %v369 = vpop.f32.mrf.mxu0
  %v370 = vadd.f32 0.0, %v369
  %v371 = vpop.f32.mrf.mxu0
  %372 = vmatprep.mubr.bf16.mxu0 0
  %373 = vmatmul.mubr.bf16.gmra.mxu0 %v221
  %v374 = vpop.f32.mrf.mxu0
  %v375 = vadd.f32 0.0, %v374
  %v376 = vpop.f32.mrf.mxu0
  %v377 = vpop.f32.mrf.mxu0
  %v378 = vadd.f32 0.0, %v377
  %v379 = vpop.f32.mrf.mxu0
  %380 = vmatprep.mubr.bf16.mxu0 0
  %381 = vmatmul.mubr.bf16.gmra.mxu0 %v222
  %v382 = vpop.f32.mrf.mxu0
  %v383 = vadd.f32 0.0, %v382
  %v384 = vpop.f32.mrf.mxu0
  %v385 = vpop.f32.mrf.mxu0
  %v386 = vadd.f32 0.0, %v385
  %v387 = vpop.f32.mrf.mxu0
  %388 = vmatprep.mubr.bf16.mxu0 0
  %389 = vmatmul.mubr.bf16.gmra.mxu0 %v223
  %v390 = vpop.f32.mrf.mxu0
  %v391 = vadd.f32 0.0, %v390
  %v392 = vpop.f32.mrf.mxu0
  %v393 = vpop.f32.mrf.mxu0
  %v394 = vadd.f32 0.0, %v393
  %v395 = vpop.f32.mrf.mxu0
  %396 = vmatprep.mubr.bf16.mxu0 0
  %397 = vmatmul.mubr.bf16.gmra.mxu0 %v224
  %v398 = vpop.f32.mrf.mxu0
  %v399 = vadd.f32 0.0, %v398
  %v400 = vpop.f32.mrf.mxu0
  %v401 = vpop.f32.mrf.mxu0
  %v402 = vadd.f32 0.0, %v401
  %v403 = vpop.f32.mrf.mxu0
  %404 = vmatprep.mubr.bf16.mxu0 0
  %405 = vmatmul.mubr.bf16.gmra.mxu0 %v225
  %v406 = vpop.f32.mrf.mxu0
  %v407 = vadd.f32 0.0, %v406
  %v408 = vpop.f32.mrf.mxu0
  %v409 = vpop.f32.mrf.mxu0
  %v410 = vadd.f32 0.0, %v409
  %v411 = vpop.f32.mrf.mxu0
  %412 = vmatprep.mubr.bf16.mxu0 0
  %413 = vmatmul.mubr.bf16.gmra.mxu0 %v226
  %v414 = vpop.f32.mrf.mxu0
  %v415 = vadd.f32 0.0, %v414
  %v416 = vpop.f32.mrf.mxu0
  %v417 = vpop.f32.mrf.mxu0
  %v418 = vadd.f32 0.0, %v417
  %v419 = vpop.f32.mrf.mxu0
  %420 = vmatprep.mubr.bf16.mxu0 0
  %421 = vmatmul.mubr.bf16.gmra.mxu0 %v227
  %v422 = vpop.f32.mrf.mxu0
  %v423 = vadd.f32 0.0, %v422
  %v424 = vpop.f32.mrf.mxu0
  %v425 = vpop.f32.mrf.mxu0
  %v426 = vadd.f32 0.0, %v425
  %v427 = vpop.f32.mrf.mxu0
  %428 = vmatprep.mubr.bf16.mxu0 0
  %429 = vmatmul.mubr.bf16.gmra.mxu0 %v228
  %v430 = vpop.f32.mrf.mxu0
  %v431 = vadd.f32 0.0, %v430
  %v432 = vpop.f32.mrf.mxu0
  %v433 = vpop.f32.mrf.mxu0
  %v434 = vadd.f32 0.0, %v433
  %v435 = vpop.f32.mrf.mxu0
  %436 = vmatprep.mubr.bf16.mxu0 0
  %437 = vmatmul.mubr.bf16.gmra.mxu0 %v229
  %v438 = vpop.f32.mrf.mxu0
  %v439 = vadd.f32 0.0, %v438
  %v440 = vpop.f32.mrf.mxu0
  %v441 = vpop.f32.mrf.mxu0
  %v442 = vadd.f32 0.0, %v441
  %v443 = vpop.f32.mrf.mxu0
  %444 = vmatprep.mubr.bf16.mxu0 0
  %445 = vmatmul.mubr.bf16.gmra.mxu0 %v230
  %v446 = vpop.f32.mrf.mxu0
  %v447 = vadd.f32 0.0, %v446
  %v448 = vpop.f32.mrf.mxu0
  %v449 = vpop.f32.mrf.mxu0
  %v450 = vadd.f32 0.0, %v449
  %v451 = vpop.f32.mrf.mxu0
  %452 = vmatprep.mubr.bf16.mxu0 0
  %453 = vmatmul.mubr.bf16.gmra.mxu0 %v231
  %v454 = vpop.f32.mrf.mxu0
  %v455 = vadd.f32 0.0, %v454
  %v456 = vpop.f32.mrf.mxu0
  %v457 = vpop.f32.mrf.mxu0
  %v458 = vadd.f32 0.0, %v457
  %v459 = vpop.f32.mrf.mxu0
  %460 = vmatprep.mubr.bf16.mxu0 0
  %461 = vmatmul.mubr.bf16.gmra.mxu0 %v232
  %v462 = vpop.f32.mrf.mxu0
  %v463 = vadd.f32 0.0, %v462
  %v464 = vpop.f32.mrf.mxu0
  %v465 = vpop.f32.mrf.mxu0
  %v466 = vadd.f32 0.0, %v465
  %v467 = vpop.f32.mrf.mxu0
  %468 = vmatprep.mubr.bf16.mxu0 0
  %469 = vmatmul.mubr.bf16.gmra.mxu0 %v233
  %v470 = vpop.f32.mrf.mxu0
  %v471 = vadd.f32 0.0, %v470
  %v472 = vpop.f32.mrf.mxu0
  %v473 = vpop.f32.mrf.mxu0
  %v474 = vadd.f32 0.0, %v473
  %v475 = vpop.f32.mrf.mxu0
  %476 = vmatprep.mubr.bf16.mxu0 0
  %477 = vmatmul.mubr.bf16.gmra.mxu0 %v234
  %v478 = vpop.f32.mrf.mxu0
  %v479 = vadd.f32 0.0, %v478
  %v480 = vpop.f32.mrf.mxu0
  %v481 = vpop.f32.mrf.mxu0
  %v482 = vadd.f32 0.0, %v481
  %v483 = vpop.f32.mrf.mxu0
  %484 = vmatprep.mubr.bf16.mxu0 0
  %485 = vmatmul.mubr.bf16.gmra.mxu0 %v235
  %v486 = vpop.f32.mrf.mxu0
  %v487 = vadd.f32 0.0, %v486
  %v488 = vpop.f32.mrf.mxu0
  %v489 = vpop.f32.mrf.mxu0
  %v490 = vadd.f32 0.0, %v489
  %v491 = vpop.f32.mrf.mxu0
  %492 = vmatprep.mubr.bf16.mxu0 0
  %493 = vmatmul.mubr.bf16.gmra.mxu0 %v236
  %v494 = vpop.f32.mrf.mxu0
  %v495 = vadd.f32 0.0, %v494
  %v496 = vpop.f32.mrf.mxu0
  %v497 = vpop.f32.mrf.mxu0
  %v498 = vadd.f32 0.0, %v497
  %v499 = vpop.f32.mrf.mxu0
  %500 = vmatprep.mubr.bf16.mxu0 0
  %501 = vmatmul.mubr.bf16.gmra.mxu0 %v237
  %v502 = vpop.f32.mrf.mxu0
  %v503 = vadd.f32 0.0, %v502
  %v504 = vpop.f32.mrf.mxu0
  %v505 = vpop.f32.mrf.mxu0
  %v506 = vadd.f32 0.0, %v505
  %v507 = vpop.f32.mrf.mxu0
  %508 = vmatprep.mubr.bf16.mxu0 0
  %509 = vmatmul.mubr.bf16.gmra.mxu0 %v238
  %v510 = vpop.f32.mrf.mxu0
  %v511 = vadd.f32 0.0, %v510
  %v512 = vpop.f32.mrf.mxu0
  %v513 = vpop.f32.mrf.mxu0
  %v514 = vadd.f32 0.0, %v513
  %v515 = vpop.f32.mrf.mxu0
  %516 = vmatprep.mubr.bf16.mxu0 0
  %517 = vmatmul.mubr.bf16.gmra.mxu0 %v239
  %v518 = vpop.f32.mrf.mxu0
  %v519 = vadd.f32 0.0, %v518
  %v520 = vpop.f32.mrf.mxu0
  %v521 = vpop.f32.mrf.mxu0
  %v522 = vadd.f32 0.0, %v521
  %v523 = vpop.f32.mrf.mxu0
  %524 = vmatprep.mubr.bf16.mxu0 0
  %525 = vmatmul.mubr.bf16.gmra.mxu0 %v240
  %v526 = vpop.f32.mrf.mxu0
  %v527 = vadd.f32 0.0, %v526
  %v528 = vpop.f32.mrf.mxu0
  %v529 = vpop.f32.mrf.mxu0
  %v530 = vadd.f32 0.0, %v529
  %v531 = vpop.f32.mrf.mxu0
  %532 = vmatprep.mubr.bf16.mxu0 0
  %533 = vmatmul.mubr.bf16.gmra.mxu0 %v241
  %v534 = vpop.f32.mrf.mxu0
  %v535 = vadd.f32 0.0, %v534
  %v536 = vpop.f32.mrf.mxu0
  %v537 = vpop.f32.mrf.mxu0
  %v538 = vadd.f32 0.0, %v537
  %v539 = vpop.f32.mrf.mxu0
  %540 = vmatprep.mubr.bf16.mxu0 0
  %541 = vmatmul.mubr.bf16.gmra.mxu0 %v242
  %v542 = vpop.f32.mrf.mxu0
  %v543 = vadd.f32 0.0, %v542
  %v544 = vpop.f32.mrf.mxu0
  %v545 = vpop.f32.mrf.mxu0
  %v546 = vadd.f32 0.0, %v545
  %v547 = vpop.f32.mrf.mxu0
  %548 = vmatprep.mubr.bf16.mxu0 0
  %549 = vmatmul.mubr.bf16.gmra.mxu0 %v243
  %v550 = vpop.f32.mrf.mxu0
  %v551 = vadd.f32 0.0, %v550
  %v552 = vpop.f32.mrf.mxu0
  %v553 = vpop.f32.mrf.mxu0
  %v554 = vadd.f32 0.0, %v553
  %v555 = vpop.f32.mrf.mxu0
  %556 = vmatprep.mubr.bf16.mxu0 0
  %557 = vmatmul.mubr.bf16.gmra.mxu0 %v244
  %v558 = vpop.f32.mrf.mxu0
  %v559 = vadd.f32 0.0, %v558
  %v560 = vpop.f32.mrf.mxu0
  %v561 = vpop.f32.mrf.mxu0
  %v562 = vadd.f32 0.0, %v561
  %v563 = vpop.f32.mrf.mxu0
  %564 = vmatprep.mubr.bf16.mxu0 0
  %565 = vmatmul.mubr.bf16.gmra.mxu0 %v245
  %v566 = vpop.f32.mrf.mxu0
  %v567 = vadd.f32 0.0, %v566
  %v568 = vpop.f32.mrf.mxu0
  %v569 = vpop.f32.mrf.mxu0
  %v570 = vadd.f32 0.0, %v569
  %v571 = vpop.f32.mrf.mxu0
  %572 = vmatprep.mubr.bf16.mxu0 0
  %573 = vmatmul.mubr.bf16.gmra.mxu0 %v246
  %v574 = vpop.f32.mrf.mxu0
  %v575 = vadd.f32 0.0, %v574
  %v576 = vpop.f32.mrf.mxu0
  %v577 = vpop.f32.mrf.mxu0
  %v578 = vadd.f32 0.0, %v577
  %v579 = vpop.f32.mrf.mxu0
  %580 = vmatprep.mubr.bf16.mxu0 0
  %581 = vmatmul.mubr.bf16.gmra.mxu0 %v247
  %v582 = vpop.f32.mrf.mxu0
  %v583 = vadd.f32 0.0, %v582
  %v584 = vpop.f32.mrf.mxu0
  %v585 = vpop.f32.mrf.mxu0
  %v586 = vadd.f32 0.0, %v585
  %v587 = vpop.f32.mrf.mxu0
  %588 = vmatprep.mubr.bf16.mxu0 0
  %589 = vmatmul.mubr.bf16.gmra.mxu0 %v248
  %v590 = vpop.f32.mrf.mxu0
  %v591 = vadd.f32 0.0, %v590
  %v592 = vpop.f32.mrf.mxu0
  %v593 = vpop.f32.mrf.mxu0
  %v594 = vadd.f32 0.0, %v593
  %v595 = vpop.f32.mrf.mxu0
  %596 = vmatprep.mubr.bf16.mxu0 0
  %597 = vmatmul.mubr.bf16.gmra.mxu0 %v249
  %v598 = vpop.f32.mrf.mxu0
  %v599 = vadd.f32 0.0, %v598
  %v600 = vpop.f32.mrf.mxu0
  %v601 = vpop.f32.mrf.mxu0
  %v602 = vadd.f32 0.0, %v601
  %v603 = vpop.f32.mrf.mxu0
  %604 = vmatprep.mubr.bf16.mxu0 0
  %605 = vmatmul.mubr.bf16.gmra.mxu0 %v250
  %v606 = vpop.f32.mrf.mxu0
  %v607 = vadd.f32 0.0, %v606
  %v608 = vpop.f32.mrf.mxu0
  %v609 = vpop.f32.mrf.mxu0
  %v610 = vadd.f32 0.0, %v609
  %v611 = vpop.f32.mrf.mxu0
  %612 = vmatprep.mubr.bf16.mxu0 0
  %613 = vmatmul.mubr.bf16.gmra.mxu0 %v251
  %v614 = vpop.f32.mrf.mxu0
  %v615 = vadd.f32 0.0, %v614
  %v616 = vpop.f32.mrf.mxu0
  %v617 = vpop.f32.mrf.mxu0
  %v618 = vadd.f32 0.0, %v617
  %v619 = vpop.f32.mrf.mxu0
  %620 = vdwg.mxu0
  %621 = vst [vmem:[%s2] sm:$0xff] %v367
  %622 = vst [vmem:[%s2 + $0x8] sm:$0xff] %v370
  %623 = vst [vmem:[%s2 + $0x10] sm:$0xff] %v375
  %624 = vst [vmem:[%s2 + $0x18] sm:$0xff] %v378
  %625 = vst [vmem:[%s2 + $0x20] sm:$0xff] %v383
  %626 = vst [vmem:[%s2 + $0x28] sm:$0xff] %v386
  %627 = vst [vmem:[%s2 + $0x30] sm:$0xff] %v391
  %628 = vst [vmem:[%s2 + $0x38] sm:$0xff] %v394
  %629 = vst [vmem:[%s2 + $0x40] sm:$0xff] %v399
  %630 = vst [vmem:[%s2 + $0x48] sm:$0xff] %v402
  %631 = vst [vmem:[%s2 + $0x50] sm:$0xff] %v407
  %632 = vst [vmem:[%s2 + $0x58] sm:$0xff] %v410
  %633 = vst [vmem:[%s2 + $0x60] sm:$0xff] %v415
  %634 = vst [vmem:[%s2 + $0x68] sm:$0xff] %v418
  %635 = vst [vmem:[%s2 + $0x70] sm:$0xff] %v423
  %636 = vst [vmem:[%s2 + $0x78] sm:$0xff] %v426
  %637 = vst [vmem:[%s2 + $0x80] sm:$0xff] %v431
  %638 = vst [vmem:[%s2 + $0x88] sm:$0xff] %v434
  %639 = vst [vmem:[%s2 + $0x90] sm:$0xff] %v439
  %640 = vst [vmem:[%s2 + $0x98] sm:$0xff] %v442
  %641 = vst [vmem:[%s2 + $0xa0] sm:$0xff] %v447
  %642 = vst [vmem:[%s2 + $0xa8] sm:$0xff] %v450
  %643 = vst [vmem:[%s2 + $0xb0] sm:$0xff] %v455
  %644 = vst [vmem:[%s2 + $0xb8] sm:$0xff] %v458
  %645 = vst [vmem:[%s2 + $0xc0] sm:$0xff] %v463
  %646 = vst [vmem:[%s2 + $0xc8] sm:$0xff] %v466
  %647 = vst [vmem:[%s2 + $0xd0] sm:$0xff] %v471
  %648 = vst [vmem:[%s2 + $0xd8] sm:$0xff] %v474
  %649 = vst [vmem:[%s2 + $0xe0] sm:$0xff] %v479
  %650 = vst [vmem:[%s2 + $0xe8] sm:$0xff] %v482
  %651 = vst [vmem:[%s2 + $0xf0] sm:$0xff] %v487
  %652 = vst [vmem:[%s2 + $0xf8] sm:$0xff] %v490
  %653 = vst [vmem:[%s2 + $0x100] sm:$0xff] %v495
  %654 = vst [vmem:[%s2 + $0x108] sm:$0xff] %v498
  %655 = vst [vmem:[%s2 + $0x110] sm:$0xff] %v503
  %656 = vst [vmem:[%s2 + $0x118] sm:$0xff] %v506
  %657 = vst [vmem:[%s2 + $0x120] sm:$0xff] %v511
  %658 = vst [vmem:[%s2 + $0x128] sm:$0xff] %v514
  %659 = vst [vmem:[%s2 + $0x130] sm:$0xff] %v519
  %660 = vst [vmem:[%s2 + $0x138] sm:$0xff] %v522
  %661 = vst [vmem:[%s2 + $0x140] sm:$0xff] %v527
  %662 = vst [vmem:[%s2 + $0x148] sm:$0xff] %v530
  %663 = vst [vmem:[%s2 + $0x150] sm:$0xff] %v535
  %664 = vst [vmem:[%s2 + $0x158] sm:$0xff] %v538
  %665 = vst [vmem:[%s2 + $0x160] sm:$0xff] %v543
  %666 = vst [vmem:[%s2 + $0x168] sm:$0xff] %v546
  %667 = vst [vmem:[%s2 + $0x170] sm:$0xff] %v551
  %668 = vst [vmem:[%s2 + $0x178] sm:$0xff] %v554
  %669 = vst [vmem:[%s2 + $0x180] sm:$0xff] %v559
  %670 = vst [vmem:[%s2 + $0x188] sm:$0xff] %v562
  %671 = vst [vmem:[%s2 + $0x190] sm:$0xff] %v567
  %672 = vst [vmem:[%s2 + $0x198] sm:$0xff] %v570
  %673 = vst [vmem:[%s2 + $0x1a0] sm:$0xff] %v575
  %674 = vst [vmem:[%s2 + $0x1a8] sm:$0xff] %v578
  %675 = vst [vmem:[%s2 + $0x1b0] sm:$0xff] %v583
  %676 = vst [vmem:[%s2 + $0x1b8] sm:$0xff] %v586
  %677 = vst [vmem:[%s2 + $0x1c0] sm:$0xff] %v591
  %678 = vst [vmem:[%s2 + $0x1c8] sm:$0xff] %v594
  %679 = vst [vmem:[%s2 + $0x1d0] sm:$0xff] %v599
  %680 = vst [vmem:[%s2 + $0x1d8] sm:$0xff] %v602
  %681 = vst [vmem:[%s2 + $0x1e0] sm:$0xff] %v607
  %682 = vst [vmem:[%s2 + $0x1e8] sm:$0xff] %v610
  %683 = vst [vmem:[%s2 + $0x1f0] sm:$0xff] %v615
  %684 = vst [vmem:[%s2 + $0x1f8] sm:$0xff] %v618
  %v685 = vld [vmem:[%s0 + $0x100] sm:$0xf]
  %v686 = vld [vmem:[%s0 + $0x104] sm:$0xf]
  %v687 = vld [vmem:[%s0 + $0x108] sm:$0xf]
  %v688 = vld [vmem:[%s0 + $0x10c] sm:$0xf]
  %v689 = vld [vmem:[%s0 + $0x110] sm:$0xf]
  %v690 = vld [vmem:[%s0 + $0x114] sm:$0xf]
  %v691 = vld [vmem:[%s0 + $0x118] sm:$0xf]
  %v692 = vld [vmem:[%s0 + $0x11c] sm:$0xf]
  %v693 = vld [vmem:[%s0 + $0x120] sm:$0xf]
  %v694 = vld [vmem:[%s0 + $0x124] sm:$0xf]
  %v695 = vld [vmem:[%s0 + $0x128] sm:$0xf]
  %v696 = vld [vmem:[%s0 + $0x12c] sm:$0xf]
  %v697 = vld [vmem:[%s0 + $0x130] sm:$0xf]
  %v698 = vld [vmem:[%s0 + $0x134] sm:$0xf]
  %v699 = vld [vmem:[%s0 + $0x138] sm:$0xf]
  %v700 = vld [vmem:[%s0 + $0x13c] sm:$0xf]
  %s701 = scalar_lea.vmem %s1, 64
  %v702 = vld [vmem:[%s701] sm:$0xf]
  %v703 = vld [vmem:[%s701 + $0x4] sm:$0xf]
  %v704 = vld [vmem:[%s701 + $0x8] sm:$0xf]
  %v705 = vld [vmem:[%s701 + $0xc] sm:$0xf]
  %v706 = vld [vmem:[%s701 + $0x10] sm:$0xf]
  %v707 = vld [vmem:[%s701 + $0x14] sm:$0xf]
  %v708 = vld [vmem:[%s701 + $0x18] sm:$0xf]
  %v709 = vld [vmem:[%s701 + $0x1c] sm:$0xf]
  %v710 = vld [vmem:[%s701 + $0x20] sm:$0xf]
  %v711 = vld [vmem:[%s701 + $0x24] sm:$0xf]
  %v712 = vld [vmem:[%s701 + $0x28] sm:$0xf]
  %v713 = vld [vmem:[%s701 + $0x2c] sm:$0xf]
  %v714 = vld [vmem:[%s701 + $0x30] sm:$0xf]
  %v715 = vld [vmem:[%s701 + $0x34] sm:$0xf]
  %v716 = vld [vmem:[%s701 + $0x38] sm:$0xf]
  %v717 = vld [vmem:[%s701 + $0x3c] sm:$0xf]
  %v734 = vunpack.c.l.b16 %v685
  %v735 = vunpack.c.l.b16 %v686
  %v736 = vunpack.c.l.b16 %v687
  %v737 = vunpack.c.l.b16 %v688
  %v738 = vunpack.c.l.b16 %v689
  %v739 = vunpack.c.l.b16 %v690
  %v740 = vunpack.c.l.b16 %v691
  %v741 = vunpack.c.l.b16 %v692
  %v742 = vunpack.c.l.b16 %v693
  %v743 = vunpack.c.l.b16 %v694
  %v744 = vunpack.c.l.b16 %v695
  %v745 = vunpack.c.l.b16 %v696
  %v746 = vunpack.c.l.b16 %v697
  %v747 = vunpack.c.l.b16 %v698
  %v748 = vunpack.c.l.b16 %v699
  %v749 = vunpack.c.l.b16 %v700
  %v750 = vpack.c.b16 %v735, %v734
  %v751 = vpack.c.b16 %v737, %v736
  %v752 = vpack.c.b16 %v739, %v738
  %v753 = vpack.c.b16 %v741, %v740
  %v754 = vpack.c.b16 %v743, %v742
  %v755 = vpack.c.b16 %v745, %v744
  %v756 = vpack.c.b16 %v747, %v746
  %v757 = vpack.c.b16 %v749, %v748
  %v782 = vunpack.c.l.b16 %v702
  %v783 = vunpack.c.l.b16 %v703
  %v784 = vunpack.c.l.b16 %v704
  %v785 = vunpack.c.l.b16 %v705
  %v786 = vunpack.c.l.b16 %v706
  %v787 = vunpack.c.l.b16 %v707
  %v788 = vunpack.c.l.b16 %v708
  %v789 = vunpack.c.l.b16 %v709
  %v790 = vunpack.c.l.b16 %v710
  %v791 = vunpack.c.l.b16 %v711
  %v792 = vunpack.c.l.b16 %v712
  %v793 = vunpack.c.l.b16 %v713
  %v794 = vunpack.c.l.b16 %v714
  %v795 = vunpack.c.l.b16 %v715
  %v796 = vunpack.c.l.b16 %v716
  %v797 = vunpack.c.l.b16 %v717
  %v798 = vpack.c.b16 %v783, %v782
  %v799 = vpack.c.b16 %v785, %v784
  %v800 = vpack.c.b16 %v787, %v786
  %v801 = vpack.c.b16 %v789, %v788
  %v802 = vpack.c.b16 %v791, %v790
  %v803 = vpack.c.b16 %v793, %v792
  %v804 = vpack.c.b16 %v795, %v794
  %v805 = vpack.c.b16 %v797, %v796
  %814 = vmatprep.subr.bf16.mxu0 0
  %815 = vmatpush1.bf16.msra.mxu0 %v805
  %816 = vmatprep.subr.bf16.mxu0 0
  %817 = vmatpush1.bf16.msra.mxu0 %v804
  %818 = vmatprep.subr.bf16.mxu0 0
  %819 = vmatpush1.bf16.msra.mxu0 %v803
  %820 = vmatprep.subr.bf16.mxu0 0
  %821 = vmatpush1.bf16.msra.mxu0 %v802
  %822 = vmatprep.subr.bf16.mxu0 0
  %823 = vmatpush1.bf16.msra.mxu0 %v801
  %824 = vmatprep.subr.bf16.mxu0 0
  %825 = vmatpush1.bf16.msra.mxu0 %v800
  %826 = vmatprep.subr.bf16.mxu0 0
  %827 = vmatpush1.bf16.msra.mxu0 %v799
  %828 = vmatprep.subr.bf16.mxu0 0
  %829 = vmatpush1.bf16.msra.mxu0 %v798
  %830 = vmatprep.subr.bf16.mxu0 0
  %831 = vmatpush2.bf16.msra.mxu0 0
  %832 = vmatprep.subr.bf16.mxu0 0
  %833 = vmatpush2.bf16.msra.mxu0 0
  %834 = vmatprep.subr.bf16.mxu0 0
  %835 = vmatpush2.bf16.msra.mxu0 0
  %836 = vmatprep.subr.bf16.mxu0 0
  %837 = vmatpush2.bf16.msra.mxu0 0
  %838 = vmatprep.subr.bf16.mxu0 0
  %839 = vmatpush2.bf16.msra.mxu0 0
  %840 = vmatprep.subr.bf16.mxu0 0
  %841 = vmatpush2.bf16.msra.mxu0 0
  %842 = vmatprep.subr.bf16.mxu0 0
  %843 = vmatpush2.bf16.msra.mxu0 0
  %844 = vmatprep.subr.bf16.mxu0 0
  %845 = vmatpush2.bf16.msra.mxu0 0
  %846 = vmatprep.mubr.bf16.mxu0 0
  %847 = vmatmul.mubr.bf16.gmra.mxu0 %v750
  %v848 = vpop.f32.mrf.mxu0
  %v849 = vadd.f32 0.0, %v848
  %v850 = vpop.f32.mrf.mxu0
  %v851 = vpop.f32.mrf.mxu0
  %v852 = vadd.f32 0.0, %v851
  %v853 = vpop.f32.mrf.mxu0
  %854 = vmatprep.mubr.bf16.mxu0 0
  %855 = vmatmul.mubr.bf16.gmra.mxu0 %v751
  %v856 = vpop.f32.mrf.mxu0
  %v857 = vadd.f32 0.0, %v856
  %v858 = vpop.f32.mrf.mxu0
  %v859 = vpop.f32.mrf.mxu0
  %v860 = vadd.f32 0.0, %v859
  %v861 = vpop.f32.mrf.mxu0
  %862 = vmatprep.mubr.bf16.mxu0 0
  %863 = vmatmul.mubr.bf16.gmra.mxu0 %v752
  %v864 = vpop.f32.mrf.mxu0
  %v865 = vadd.f32 0.0, %v864
  %v866 = vpop.f32.mrf.mxu0
  %v867 = vpop.f32.mrf.mxu0
  %v868 = vadd.f32 0.0, %v867
  %v869 = vpop.f32.mrf.mxu0
  %870 = vmatprep.mubr.bf16.mxu0 0
  %871 = vmatmul.mubr.bf16.gmra.mxu0 %v753
  %v872 = vpop.f32.mrf.mxu0
  %v873 = vadd.f32 0.0, %v872
  %v874 = vpop.f32.mrf.mxu0
  %v875 = vpop.f32.mrf.mxu0
  %v876 = vadd.f32 0.0, %v875
  %v877 = vpop.f32.mrf.mxu0
  %878 = vmatprep.mubr.bf16.mxu0 0
  %879 = vmatmul.mubr.bf16.gmra.mxu0 %v754
  %v880 = vpop.f32.mrf.mxu0
  %v881 = vadd.f32 0.0, %v880
  %v882 = vpop.f32.mrf.mxu0
  %v883 = vpop.f32.mrf.mxu0
  %v884 = vadd.f32 0.0, %v883
  %v885 = vpop.f32.mrf.mxu0
  %886 = vmatprep.mubr.bf16.mxu0 0
  %887 = vmatmul.mubr.bf16.gmra.mxu0 %v755
  %v888 = vpop.f32.mrf.mxu0
  %v889 = vadd.f32 0.0, %v888
  %v890 = vpop.f32.mrf.mxu0
  %v891 = vpop.f32.mrf.mxu0
  %v892 = vadd.f32 0.0, %v891
  %v893 = vpop.f32.mrf.mxu0
  %894 = vmatprep.mubr.bf16.mxu0 0
  %895 = vmatmul.mubr.bf16.gmra.mxu0 %v756
  %v896 = vpop.f32.mrf.mxu0
  %v897 = vadd.f32 0.0, %v896
  %v898 = vpop.f32.mrf.mxu0
  %v899 = vpop.f32.mrf.mxu0
  %v900 = vadd.f32 0.0, %v899
  %v901 = vpop.f32.mrf.mxu0
  %902 = vmatprep.mubr.bf16.mxu0 0
  %903 = vmatmul.mubr.bf16.gmra.mxu0 %v757
  %v904 = vpop.f32.mrf.mxu0
  %v905 = vadd.f32 0.0, %v904
  %v906 = vpop.f32.mrf.mxu0
  %v907 = vpop.f32.mrf.mxu0
  %v908 = vadd.f32 0.0, %v907
  %v909 = vpop.f32.mrf.mxu0
  %910 = vdwg.mxu0
  %911 = vst [vmem:[%s2 + $0x200] sm:$0xff] %v849
  %912 = vst [vmem:[%s2 + $0x208] sm:$0xff] %v852
  %913 = vst [vmem:[%s2 + $0x210] sm:$0xff] %v857
  %914 = vst [vmem:[%s2 + $0x218] sm:$0xff] %v860
  %915 = vst [vmem:[%s2 + $0x220] sm:$0xff] %v865
  %916 = vst [vmem:[%s2 + $0x228] sm:$0xff] %v868
  %917 = vst [vmem:[%s2 + $0x230] sm:$0xff] %v873
  %918 = vst [vmem:[%s2 + $0x238] sm:$0xff] %v876
  %919 = vst [vmem:[%s2 + $0x240] sm:$0xff] %v881
  %920 = vst [vmem:[%s2 + $0x248] sm:$0xff] %v884
  %921 = vst [vmem:[%s2 + $0x250] sm:$0xff] %v889
  %922 = vst [vmem:[%s2 + $0x258] sm:$0xff] %v892
  %923 = vst [vmem:[%s2 + $0x260] sm:$0xff] %v897
  %924 = vst [vmem:[%s2 + $0x268] sm:$0xff] %v900
  %925 = vst [vmem:[%s2 + $0x270] sm:$0xff] %v905
  %926 = vst [vmem:[%s2 + $0x278] sm:$0xff] %v908
  %v927 = vld [vmem:[%s0 + $0x140] sm:$0xf]
  %v928 = vld [vmem:[%s0 + $0x144] sm:$0xf]
  %v929 = vld [vmem:[%s0 + $0x148] sm:$0xf]
  %v930 = vld [vmem:[%s0 + $0x14c] sm:$0xf]
  %v931 = vld [vmem:[%s0 + $0x150] sm:$0xf]
  %v932 = vld [vmem:[%s0 + $0x154] sm:$0xf]
  %v933 = vld [vmem:[%s0 + $0x158] sm:$0xf]
  %v934 = vld [vmem:[%s0 + $0x15c] sm:$0xf]
  %v935 = vld [vmem:[%s0 + $0x160] sm:$0xf]
  %v936 = vld [vmem:[%s0 + $0x164] sm:$0xf]
  %v937 = vld [vmem:[%s0 + $0x168] sm:$0xf]
  %v938 = vld [vmem:[%s0 + $0x16c] sm:$0xf]
  %v939 = vld [vmem:[%s0 + $0x170] sm:$0xf]
  %v940 = vld [vmem:[%s0 + $0x174] sm:$0xf]
  %v941 = vld [vmem:[%s0 + $0x178] sm:$0xf]
  %v942 = vld [vmem:[%s0 + $0x17c] sm:$0xf]
  %s943 = scalar_lea.vmem %s1, 128
  %v944 = vld [vmem:[%s943] sm:$0xf]
  %v945 = vld [vmem:[%s943 + $0x4] sm:$0xf]
  %v946 = vld [vmem:[%s943 + $0x8] sm:$0xf]
  %v947 = vld [vmem:[%s943 + $0xc] sm:$0xf]
  %v948 = vld [vmem:[%s943 + $0x10] sm:$0xf]
  %v949 = vld [vmem:[%s943 + $0x14] sm:$0xf]
  %v950 = vld [vmem:[%s943 + $0x18] sm:$0xf]
  %v951 = vld [vmem:[%s943 + $0x1c] sm:$0xf]
  %v952 = vld [vmem:[%s943 + $0x20] sm:$0xf]
  %v953 = vld [vmem:[%s943 + $0x24] sm:$0xf]
  %v954 = vld [vmem:[%s943 + $0x28] sm:$0xf]
  %v955 = vld [vmem:[%s943 + $0x2c] sm:$0xf]
  %v956 = vld [vmem:[%s943 + $0x30] sm:$0xf]
  %v957 = vld [vmem:[%s943 + $0x34] sm:$0xf]
  %v958 = vld [vmem:[%s943 + $0x38] sm:$0xf]
  %v959 = vld [vmem:[%s943 + $0x3c] sm:$0xf]
  %v976 = vunpack.c.l.b16 %v927
  %v977 = vunpack.c.l.b16 %v928
  %v978 = vunpack.c.l.b16 %v929
  %v979 = vunpack.c.l.b16 %v930
  %v980 = vunpack.c.l.b16 %v931
  %v981 = vunpack.c.l.b16 %v932
  %v982 = vunpack.c.l.b16 %v933
  %v983 = vunpack.c.l.b16 %v934
  %v984 = vunpack.c.l.b16 %v935
  %v985 = vunpack.c.l.b16 %v936
  %v986 = vunpack.c.l.b16 %v937
  %v987 = vunpack.c.l.b16 %v938
  %v988 = vunpack.c.l.b16 %v939
  %v989 = vunpack.c.l.b16 %v940
  %v990 = vunpack.c.l.b16 %v941
  %v991 = vunpack.c.l.b16 %v942
  %v992 = vpack.c.b16 %v977, %v976
  %v993 = vpack.c.b16 %v979, %v978
  %v994 = vpack.c.b16 %v981, %v980
  %v995 = vpack.c.b16 %v983, %v982
  %v996 = vpack.c.b16 %v985, %v984
  %v997 = vpack.c.b16 %v987, %v986
  %v998 = vpack.c.b16 %v989, %v988
  %v999 = vpack.c.b16 %v991, %v990
  %v1024 = vunpack.c.l.b16 %v944
  %v1025 = vunpack.c.l.b16 %v945
  %v1026 = vunpack.c.l.b16 %v946
  %v1027 = vunpack.c.l.b16 %v947
  %v1028 = vunpack.c.l.b16 %v948
  %v1029 = vunpack.c.l.b16 %v949
  %v1030 = vunpack.c.l.b16 %v950
  %v1031 = vunpack.c.l.b16 %v951
  %v1032 = vunpack.c.l.b16 %v952
  %v1033 = vunpack.c.l.b16 %v953
  %v1034 = vunpack.c.l.b16 %v954
  %v1035 = vunpack.c.l.b16 %v955
  %v1036 = vunpack.c.l.b16 %v956
  %v1037 = vunpack.c.l.b16 %v957
  %v1038 = vunpack.c.l.b16 %v958
  %v1039 = vunpack.c.l.b16 %v959
  %v1040 = vpack.c.b16 %v1025, %v1024
  %v1041 = vpack.c.b16 %v1027, %v1026
  %v1042 = vpack.c.b16 %v1029, %v1028
  %v1043 = vpack.c.b16 %v1031, %v1030
  %v1044 = vpack.c.b16 %v1033, %v1032
  %v1045 = vpack.c.b16 %v1035, %v1034
  %v1046 = vpack.c.b16 %v1037, %v1036
  %v1047 = vpack.c.b16 %v1039, %v1038
  %1056 = vmatprep.subr.bf16.mxu0 0
  %1057 = vmatpush1.bf16.msra.mxu0 %v1047
  %1058 = vmatprep.subr.bf16.mxu0 0
  %1059 = vmatpush1.bf16.msra.mxu0 %v1046
  %1060 = vmatprep.subr.bf16.mxu0 0
  %1061 = vmatpush1.bf16.msra.mxu0 %v1045
  %1062 = vmatprep.subr.bf16.mxu0 0
  %1063 = vmatpush1.bf16.msra.mxu0 %v1044
  %1064 = vmatprep.subr.bf16.mxu0 0
  %1065 = vmatpush1.bf16.msra.mxu0 %v1043
  %1066 = vmatprep.subr.bf16.mxu0 0
  %1067 = vmatpush1.bf16.msra.mxu0 %v1042
  %1068 = vmatprep.subr.bf16.mxu0 0
  %1069 = vmatpush1.bf16.msra.mxu0 %v1041
  %1070 = vmatprep.subr.bf16.mxu0 0
  %1071 = vmatpush1.bf16.msra.mxu0 %v1040
  %1072 = vmatprep.subr.bf16.mxu0 0
  %1073 = vmatpush2.bf16.msra.mxu0 0
  %1074 = vmatprep.subr.bf16.mxu0 0
  %1075 = vmatpush2.bf16.msra.mxu0 0
  %1076 = vmatprep.subr.bf16.mxu0 0
  %1077 = vmatpush2.bf16.msra.mxu0 0
  %1078 = vmatprep.subr.bf16.mxu0 0
  %1079 = vmatpush2.bf16.msra.mxu0 0
  %1080 = vmatprep.subr.bf16.mxu0 0
  %1081 = vmatpush2.bf16.msra.mxu0 0
  %1082 = vmatprep.subr.bf16.mxu0 0
  %1083 = vmatpush2.bf16.msra.mxu0 0
  %1084 = vmatprep.subr.bf16.mxu0 0
  %1085 = vmatpush2.bf16.msra.mxu0 0
  %1086 = vmatprep.subr.bf16.mxu0 0
  %1087 = vmatpush2.bf16.msra.mxu0 0
  %1088 = vmatprep.mubr.bf16.mxu0 0
  %1089 = vmatmul.mubr.bf16.gmra.mxu0 %v992
  %v1090 = vpop.f32.mrf.mxu0
  %v1091 = vadd.f32 0.0, %v1090
  %v1092 = vpop.f32.mrf.mxu0
  %v1093 = vpop.f32.mrf.mxu0
  %v1094 = vadd.f32 0.0, %v1093
  %v1095 = vpop.f32.mrf.mxu0
  %1096 = vmatprep.mubr.bf16.mxu0 0
  %1097 = vmatmul.mubr.bf16.gmra.mxu0 %v993
  %v1098 = vpop.f32.mrf.mxu0
  %v1099 = vadd.f32 0.0, %v1098
  %v1100 = vpop.f32.mrf.mxu0
  %v1101 = vpop.f32.mrf.mxu0
  %v1102 = vadd.f32 0.0, %v1101
  %v1103 = vpop.f32.mrf.mxu0
  %1104 = vmatprep.mubr.bf16.mxu0 0
  %1105 = vmatmul.mubr.bf16.gmra.mxu0 %v994
  %v1106 = vpop.f32.mrf.mxu0
  %v1107 = vadd.f32 0.0, %v1106
  %v1108 = vpop.f32.mrf.mxu0
  %v1109 = vpop.f32.mrf.mxu0
  %v1110 = vadd.f32 0.0, %v1109
  %v1111 = vpop.f32.mrf.mxu0
  %1112 = vmatprep.mubr.bf16.mxu0 0
  %1113 = vmatmul.mubr.bf16.gmra.mxu0 %v995
  %v1114 = vpop.f32.mrf.mxu0
  %v1115 = vadd.f32 0.0, %v1114
  %v1116 = vpop.f32.mrf.mxu0
  %v1117 = vpop.f32.mrf.mxu0
  %v1118 = vadd.f32 0.0, %v1117
  %v1119 = vpop.f32.mrf.mxu0
  %1120 = vmatprep.mubr.bf16.mxu0 0
  %1121 = vmatmul.mubr.bf16.gmra.mxu0 %v996
  %v1122 = vpop.f32.mrf.mxu0
  %v1123 = vadd.f32 0.0, %v1122
  %v1124 = vpop.f32.mrf.mxu0
  %v1125 = vpop.f32.mrf.mxu0
  %v1126 = vadd.f32 0.0, %v1125
  %v1127 = vpop.f32.mrf.mxu0
  %1128 = vmatprep.mubr.bf16.mxu0 0
  %1129 = vmatmul.mubr.bf16.gmra.mxu0 %v997
  %v1130 = vpop.f32.mrf.mxu0
  %v1131 = vadd.f32 0.0, %v1130
  %v1132 = vpop.f32.mrf.mxu0
  %v1133 = vpop.f32.mrf.mxu0
  %v1134 = vadd.f32 0.0, %v1133
  %v1135 = vpop.f32.mrf.mxu0
  %1136 = vmatprep.mubr.bf16.mxu0 0
  %1137 = vmatmul.mubr.bf16.gmra.mxu0 %v998
  %v1138 = vpop.f32.mrf.mxu0
  %v1139 = vadd.f32 0.0, %v1138
  %v1140 = vpop.f32.mrf.mxu0
  %v1141 = vpop.f32.mrf.mxu0
  %v1142 = vadd.f32 0.0, %v1141
  %v1143 = vpop.f32.mrf.mxu0
  %1144 = vmatprep.mubr.bf16.mxu0 0
  %1145 = vmatmul.mubr.bf16.gmra.mxu0 %v999
  %v1146 = vpop.f32.mrf.mxu0
  %v1147 = vadd.f32 0.0, %v1146
  %v1148 = vpop.f32.mrf.mxu0
  %v1149 = vpop.f32.mrf.mxu0
  %v1150 = vadd.f32 0.0, %v1149
  %v1151 = vpop.f32.mrf.mxu0
  %1152 = vdwg.mxu0
  %1153 = vst [vmem:[%s2 + $0x280] sm:$0xff] %v1091
  %1154 = vst [vmem:[%s2 + $0x288] sm:$0xff] %v1094
  %1155 = vst [vmem:[%s2 + $0x290] sm:$0xff] %v1099
  %1156 = vst [vmem:[%s2 + $0x298] sm:$0xff] %v1102
  %1157 = vst [vmem:[%s2 + $0x2a0] sm:$0xff] %v1107
  %1158 = vst [vmem:[%s2 + $0x2a8] sm:$0xff] %v1110
  %1159 = vst [vmem:[%s2 + $0x2b0] sm:$0xff] %v1115
  %1160 = vst [vmem:[%s2 + $0x2b8] sm:$0xff] %v1118
  %1161 = vst [vmem:[%s2 + $0x2c0] sm:$0xff] %v1123
  %1162 = vst [vmem:[%s2 + $0x2c8] sm:$0xff] %v1126
  %1163 = vst [vmem:[%s2 + $0x2d0] sm:$0xff] %v1131
  %1164 = vst [vmem:[%s2 + $0x2d8] sm:$0xff] %v1134
  %1165 = vst [vmem:[%s2 + $0x2e0] sm:$0xff] %v1139
  %1166 = vst [vmem:[%s2 + $0x2e8] sm:$0xff] %v1142
  %1167 = vst [vmem:[%s2 + $0x2f0] sm:$0xff] %v1147
  %1168 = vst [vmem:[%s2 + $0x2f8] sm:$0xff] %v1150
  %v1169 = vld [vmem:[%s0 + $0x180] sm:$0xf]
  %v1170 = vld [vmem:[%s0 + $0x184] sm:$0xf]
  %v1171 = vld [vmem:[%s0 + $0x188] sm:$0xf]
  %v1172 = vld [vmem:[%s0 + $0x18c] sm:$0xf]
  %s1173 = scalar_lea.vmem %s1, 192
  %v1174 = vld [vmem:[%s1173] sm:$0xf]
  %v1175 = vld [vmem:[%s1173 + $0x4] sm:$0xf]
  %v1176 = vld [vmem:[%s1173 + $0x8] sm:$0xf]
  %v1177 = vld [vmem:[%s1173 + $0xc] sm:$0xf]
  %v1178 = vld [vmem:[%s1173 + $0x10] sm:$0xf]
  %v1179 = vld [vmem:[%s1173 + $0x14] sm:$0xf]
  %v1180 = vld [vmem:[%s1173 + $0x18] sm:$0xf]
  %v1181 = vld [vmem:[%s1173 + $0x1c] sm:$0xf]
  %v1182 = vld [vmem:[%s1173 + $0x20] sm:$0xf]
  %v1183 = vld [vmem:[%s1173 + $0x24] sm:$0xf]
  %v1184 = vld [vmem:[%s1173 + $0x28] sm:$0xf]
  %v1185 = vld [vmem:[%s1173 + $0x2c] sm:$0xf]
  %v1186 = vld [vmem:[%s1173 + $0x30] sm:$0xf]
  %v1187 = vld [vmem:[%s1173 + $0x34] sm:$0xf]
  %v1188 = vld [vmem:[%s1173 + $0x38] sm:$0xf]
  %v1189 = vld [vmem:[%s1173 + $0x3c] sm:$0xf]
  %v1194 = vunpack.c.l.b16 %v1169
  %v1195 = vunpack.c.l.b16 %v1170
  %v1196 = vunpack.c.l.b16 %v1171
  %v1197 = vunpack.c.l.b16 %v1172
  %v1198 = vpack.c.b16 %v1195, %v1194
  %v1199 = vpack.c.b16 %v1197, %v1196
  %v1218 = vunpack.c.l.b16 %v1174
  %v1219 = vunpack.c.l.b16 %v1175
  %v1220 = vunpack.c.l.b16 %v1176
  %v1221 = vunpack.c.l.b16 %v1177
  %v1222 = vunpack.c.l.b16 %v1178
  %v1223 = vunpack.c.l.b16 %v1179
  %v1224 = vunpack.c.l.b16 %v1180
  %v1225 = vunpack.c.l.b16 %v1181
  %v1226 = vunpack.c.l.b16 %v1182
  %v1227 = vunpack.c.l.b16 %v1183
  %v1228 = vunpack.c.l.b16 %v1184
  %v1229 = vunpack.c.l.b16 %v1185
  %v1230 = vunpack.c.l.b16 %v1186
  %v1231 = vunpack.c.l.b16 %v1187
  %v1232 = vunpack.c.l.b16 %v1188
  %v1233 = vunpack.c.l.b16 %v1189
  %v1234 = vpack.c.b16 %v1219, %v1218
  %v1235 = vpack.c.b16 %v1221, %v1220
  %v1236 = vpack.c.b16 %v1223, %v1222
  %v1237 = vpack.c.b16 %v1225, %v1224
  %v1238 = vpack.c.b16 %v1227, %v1226
  %v1239 = vpack.c.b16 %v1229, %v1228
  %v1240 = vpack.c.b16 %v1231, %v1230
  %v1241 = vpack.c.b16 %v1233, %v1232
  %1250 = vmatprep.subr.bf16.mxu0 0
  %1251 = vmatpush1.bf16.msra.mxu0 %v1241
  %1252 = vmatprep.subr.bf16.mxu0 0
  %1253 = vmatpush1.bf16.msra.mxu0 %v1240
  %1254 = vmatprep.subr.bf16.mxu0 0
  %1255 = vmatpush1.bf16.msra.mxu0 %v1239
  %1256 = vmatprep.subr.bf16.mxu0 0
  %1257 = vmatpush1.bf16.msra.mxu0 %v1238
  %1258 = vmatprep.subr.bf16.mxu0 0
  %1259 = vmatpush1.bf16.msra.mxu0 %v1237
  %1260 = vmatprep.subr.bf16.mxu0 0
  %1261 = vmatpush1.bf16.msra.mxu0 %v1236
  %1262 = vmatprep.subr.bf16.mxu0 0
  %1263 = vmatpush1.bf16.msra.mxu0 %v1235
  %1264 = vmatprep.subr.bf16.mxu0 0
  %1265 = vmatpush1.bf16.msra.mxu0 %v1234
  %1266 = vmatprep.subr.bf16.mxu0 0
  %1267 = vmatpush2.bf16.msra.mxu0 0
  %1268 = vmatprep.subr.bf16.mxu0 0
  %1269 = vmatpush2.bf16.msra.mxu0 0
  %1270 = vmatprep.subr.bf16.mxu0 0
  %1271 = vmatpush2.bf16.msra.mxu0 0
  %1272 = vmatprep.subr.bf16.mxu0 0
  %1273 = vmatpush2.bf16.msra.mxu0 0
  %1274 = vmatprep.subr.bf16.mxu0 0
  %1275 = vmatpush2.bf16.msra.mxu0 0
  %1276 = vmatprep.subr.bf16.mxu0 0
  %1277 = vmatpush2.bf16.msra.mxu0 0
  %1278 = vmatprep.subr.bf16.mxu0 0
  %1279 = vmatpush2.bf16.msra.mxu0 0
  %1280 = vmatprep.subr.bf16.mxu0 0
  %1281 = vmatpush2.bf16.msra.mxu0 0
  %1282 = vmatprep.mubr.bf16.mxu0 0
  %1283 = vmatmul.mubr.bf16.gmra.mxu0 %v1198
  %v1284 = vpop.f32.mrf.mxu0
  %v1285 = vadd.f32 0.0, %v1284
  %v1286 = vpop.f32.mrf.mxu0
  %v1287 = vpop.f32.mrf.mxu0
  %v1288 = vadd.f32 0.0, %v1287
  %v1289 = vpop.f32.mrf.mxu0
  %1290 = vmatprep.mubr.bf16.mxu0 0
  %1291 = vmatmul.mubr.bf16.gmra.mxu0 %v1199
  %v1292 = vpop.f32.mrf.mxu0
  %v1293 = vadd.f32 0.0, %v1292
  %v1294 = vpop.f32.mrf.mxu0
  %v1295 = vpop.f32.mrf.mxu0
  %v1296 = vadd.f32 0.0, %v1295
  %v1297 = vpop.f32.mrf.mxu0
  %1298 = vdwg.mxu0
  %1299 = vst [vmem:[%s2 + $0x300] sm:$0xff] %v1285
  %1300 = vst [vmem:[%s2 + $0x308] sm:$0xff] %v1288
  %1301 = vst [vmem:[%s2 + $0x310] sm:$0xff] %v1293
  %1302 = vst [vmem:[%s2 + $0x318] sm:$0xff] %v1296
  %v1303 = vld [vmem:[%s0 + $0x190] sm:$0xf]
  %v1304 = vld [vmem:[%s0 + $0x194] sm:$0xf]
  %v1305 = vld [vmem:[%s0 + $0x198] sm:$0xf]
  %v1306 = vld [vmem:[%s0 + $0x19c] sm:$0xf]
  %s1307 = scalar_lea.vmem %s1, 256
  %v1308 = vld [vmem:[%s1307] sm:$0xf]
  %v1309 = vld [vmem:[%s1307 + $0x4] sm:$0xf]
  %v1310 = vld [vmem:[%s1307 + $0x8] sm:$0xf]
  %v1311 = vld [vmem:[%s1307 + $0xc] sm:$0xf]
  %v1312 = vld [vmem:[%s1307 + $0x10] sm:$0xf]
  %v1313 = vld [vmem:[%s1307 + $0x14] sm:$0xf]
  %v1314 = vld [vmem:[%s1307 + $0x18] sm:$0xf]
  %v1315 = vld [vmem:[%s1307 + $0x1c] sm:$0xf]
  %v1316 = vld [vmem:[%s1307 + $0x20] sm:$0xf]
  %v1317 = vld [vmem:[%s1307 + $0x24] sm:$0xf]
  %v1318 = vld [vmem:[%s1307 + $0x28] sm:$0xf]
  %v1319 = vld [vmem:[%s1307 + $0x2c] sm:$0xf]
  %v1320 = vld [vmem:[%s1307 + $0x30] sm:$0xf]
  %v1321 = vld [vmem:[%s1307 + $0x34] sm:$0xf]
  %v1322 = vld [vmem:[%s1307 + $0x38] sm:$0xf]
  %v1323 = vld [vmem:[%s1307 + $0x3c] sm:$0xf]
  %v1328 = vunpack.c.l.b16 %v1303
  %v1329 = vunpack.c.l.b16 %v1304
  %v1330 = vunpack.c.l.b16 %v1305
  %v1331 = vunpack.c.l.b16 %v1306
  %v1332 = vpack.c.b16 %v1329, %v1328
  %v1333 = vpack.c.b16 %v1331, %v1330
  %v1352 = vunpack.c.l.b16 %v1308
  %v1353 = vunpack.c.l.b16 %v1309
  %v1354 = vunpack.c.l.b16 %v1310
  %v1355 = vunpack.c.l.b16 %v1311
  %v1356 = vunpack.c.l.b16 %v1312
  %v1357 = vunpack.c.l.b16 %v1313
  %v1358 = vunpack.c.l.b16 %v1314
  %v1359 = vunpack.c.l.b16 %v1315
  %v1360 = vunpack.c.l.b16 %v1316
  %v1361 = vunpack.c.l.b16 %v1317
  %v1362 = vunpack.c.l.b16 %v1318
  %v1363 = vunpack.c.l.b16 %v1319
  %v1364 = vunpack.c.l.b16 %v1320
  %v1365 = vunpack.c.l.b16 %v1321
  %v1366 = vunpack.c.l.b16 %v1322
  %v1367 = vunpack.c.l.b16 %v1323
  %v1368 = vpack.c.b16 %v1353, %v1352
  %v1369 = vpack.c.b16 %v1355, %v1354
  %v1370 = vpack.c.b16 %v1357, %v1356
  %v1371 = vpack.c.b16 %v1359, %v1358
  %v1372 = vpack.c.b16 %v1361, %v1360
  %v1373 = vpack.c.b16 %v1363, %v1362
  %v1374 = vpack.c.b16 %v1365, %v1364
  %v1375 = vpack.c.b16 %v1367, %v1366
  %1384 = vmatprep.subr.bf16.mxu0 0
  %1385 = vmatpush1.bf16.msra.mxu0 %v1375
  %1386 = vmatprep.subr.bf16.mxu0 0
  %1387 = vmatpush1.bf16.msra.mxu0 %v1374
  %1388 = vmatprep.subr.bf16.mxu0 0
  %1389 = vmatpush1.bf16.msra.mxu0 %v1373
  %1390 = vmatprep.subr.bf16.mxu0 0
  %1391 = vmatpush1.bf16.msra.mxu0 %v1372
  %1392 = vmatprep.subr.bf16.mxu0 0
  %1393 = vmatpush1.bf16.msra.mxu0 %v1371
  %1394 = vmatprep.subr.bf16.mxu0 0
  %1395 = vmatpush1.bf16.msra.mxu0 %v1370
  %1396 = vmatprep.subr.bf16.mxu0 0
  %1397 = vmatpush1.bf16.msra.mxu0 %v1369
  %1398 = vmatprep.subr.bf16.mxu0 0
  %1399 = vmatpush1.bf16.msra.mxu0 %v1368
  %1400 = vmatprep.subr.bf16.mxu0 0
  %1401 = vmatpush2.bf16.msra.mxu0 0
  %1402 = vmatprep.subr.bf16.mxu0 0
  %1403 = vmatpush2.bf16.msra.mxu0 0
  %1404 = vmatprep.subr.bf16.mxu0 0
  %1405 = vmatpush2.bf16.msra.mxu0 0
  %1406 = vmatprep.subr.bf16.mxu0 0
  %1407 = vmatpush2.bf16.msra.mxu0 0
  %1408 = vmatprep.subr.bf16.mxu0 0
  %1409 = vmatpush2.bf16.msra.mxu0 0
  %1410 = vmatprep.subr.bf16.mxu0 0
  %1411 = vmatpush2.bf16.msra.mxu0 0
  %1412 = vmatprep.subr.bf16.mxu0 0
  %1413 = vmatpush2.bf16.msra.mxu0 0
  %1414 = vmatprep.subr.bf16.mxu0 0
  %1415 = vmatpush2.bf16.msra.mxu0 0
  %1416 = vmatprep.mubr.bf16.mxu0 0
  %1417 = vmatmul.mubr.bf16.gmra.mxu0 %v1332
  %v1418 = vpop.f32.mrf.mxu0
  %v1419 = vadd.f32 0.0, %v1418
  %v1420 = vpop.f32.mrf.mxu0
  %v1421 = vpop.f32.mrf.mxu0
  %v1422 = vadd.f32 0.0, %v1421
  %v1423 = vpop.f32.mrf.mxu0
  %1424 = vmatprep.mubr.bf16.mxu0 0
  %1425 = vmatmul.mubr.bf16.gmra.mxu0 %v1333
  %v1426 = vpop.f32.mrf.mxu0
  %v1427 = vadd.f32 0.0, %v1426
  %v1428 = vpop.f32.mrf.mxu0
  %v1429 = vpop.f32.mrf.mxu0
  %v1430 = vadd.f32 0.0, %v1429
  %v1431 = vpop.f32.mrf.mxu0
  %1432 = vdwg.mxu0
  %1433 = vst [vmem:[%s2 + $0x320] sm:$0xff] %v1419
  %1434 = vst [vmem:[%s2 + $0x328] sm:$0xff] %v1422
  %1435 = vst [vmem:[%s2 + $0x330] sm:$0xff] %v1427
  %1436 = vst [vmem:[%s2 + $0x338] sm:$0xff] %v1430
  %v1437 = vld [vmem:[%s0 + $0x1a0] sm:$0xf]
  %v1438 = vld [vmem:[%s0 + $0x1a4] sm:$0xf]
  %s1439 = scalar_lea.vmem %s1, 320
  %v1440 = vld [vmem:[%s1439] sm:$0xf]
  %v1441 = vld [vmem:[%s1439 + $0x4] sm:$0xf]
  %v1442 = vld [vmem:[%s1439 + $0x8] sm:$0xf]
  %v1443 = vld [vmem:[%s1439 + $0xc] sm:$0xf]
  %v1444 = vld [vmem:[%s1439 + $0x10] sm:$0xf]
  %v1445 = vld [vmem:[%s1439 + $0x14] sm:$0xf]
  %v1446 = vld [vmem:[%s1439 + $0x18] sm:$0xf]
  %v1447 = vld [vmem:[%s1439 + $0x1c] sm:$0xf]
  %v1448 = vld [vmem:[%s1439 + $0x20] sm:$0xf]
  %v1449 = vld [vmem:[%s1439 + $0x24] sm:$0xf]
  %v1450 = vld [vmem:[%s1439 + $0x28] sm:$0xf]
  %v1451 = vld [vmem:[%s1439 + $0x2c] sm:$0xf]
  %v1452 = vld [vmem:[%s1439 + $0x30] sm:$0xf]
  %v1453 = vld [vmem:[%s1439 + $0x34] sm:$0xf]
  %v1454 = vld [vmem:[%s1439 + $0x38] sm:$0xf]
  %v1455 = vld [vmem:[%s1439 + $0x3c] sm:$0xf]
  %v1458 = vunpack.c.l.b16 %v1437
  %v1459 = vunpack.c.l.b16 %v1438
  %v1460 = vpack.c.b16 %v1459, %v1458
  %v1478 = vunpack.c.l.b16 %v1440
  %v1479 = vunpack.c.l.b16 %v1441
  %v1480 = vunpack.c.l.b16 %v1442
  %v1481 = vunpack.c.l.b16 %v1443
  %v1482 = vunpack.c.l.b16 %v1444
  %v1483 = vunpack.c.l.b16 %v1445
  %v1484 = vunpack.c.l.b16 %v1446
  %v1485 = vunpack.c.l.b16 %v1447
  %v1486 = vunpack.c.l.b16 %v1448
  %v1487 = vunpack.c.l.b16 %v1449
  %v1488 = vunpack.c.l.b16 %v1450
  %v1489 = vunpack.c.l.b16 %v1451
  %v1490 = vunpack.c.l.b16 %v1452
  %v1491 = vunpack.c.l.b16 %v1453
  %v1492 = vunpack.c.l.b16 %v1454
  %v1493 = vunpack.c.l.b16 %v1455
  %v1494 = vpack.c.b16 %v1479, %v1478
  %v1495 = vpack.c.b16 %v1481, %v1480
  %v1496 = vpack.c.b16 %v1483, %v1482
  %v1497 = vpack.c.b16 %v1485, %v1484
  %v1498 = vpack.c.b16 %v1487, %v1486
  %v1499 = vpack.c.b16 %v1489, %v1488
  %v1500 = vpack.c.b16 %v1491, %v1490
  %v1501 = vpack.c.b16 %v1493, %v1492
  %1510 = vmatprep.subr.bf16.mxu0 0
  %1511 = vmatpush1.bf16.msra.mxu0 %v1501
  %1512 = vmatprep.subr.bf16.mxu0 0
  %1513 = vmatpush1.bf16.msra.mxu0 %v1500
  %1514 = vmatprep.subr.bf16.mxu0 0
  %1515 = vmatpush1.bf16.msra.mxu0 %v1499
  %1516 = vmatprep.subr.bf16.mxu0 0
  %1517 = vmatpush1.bf16.msra.mxu0 %v1498
  %1518 = vmatprep.subr.bf16.mxu0 0
  %1519 = vmatpush1.bf16.msra.mxu0 %v1497
  %1520 = vmatprep.subr.bf16.mxu0 0
  %1521 = vmatpush1.bf16.msra.mxu0 %v1496
  %1522 = vmatprep.subr.bf16.mxu0 0
  %1523 = vmatpush1.bf16.msra.mxu0 %v1495
  %1524 = vmatprep.subr.bf16.mxu0 0
  %1525 = vmatpush1.bf16.msra.mxu0 %v1494
  %1526 = vmatprep.subr.bf16.mxu0 0
  %1527 = vmatpush2.bf16.msra.mxu0 0
  %1528 = vmatprep.subr.bf16.mxu0 0
  %1529 = vmatpush2.bf16.msra.mxu0 0
  %1530 = vmatprep.subr.bf16.mxu0 0
  %1531 = vmatpush2.bf16.msra.mxu0 0
  %1532 = vmatprep.subr.bf16.mxu0 0
  %1533 = vmatpush2.bf16.msra.mxu0 0
  %1534 = vmatprep.subr.bf16.mxu0 0
  %1535 = vmatpush2.bf16.msra.mxu0 0
  %1536 = vmatprep.subr.bf16.mxu0 0
  %1537 = vmatpush2.bf16.msra.mxu0 0
  %1538 = vmatprep.subr.bf16.mxu0 0
  %1539 = vmatpush2.bf16.msra.mxu0 0
  %1540 = vmatprep.subr.bf16.mxu0 0
  %1541 = vmatpush2.bf16.msra.mxu0 0
  %1542 = vmatprep.mubr.bf16.mxu0 0
  %1543 = vmatmul.mubr.bf16.gmra.mxu0 %v1460
  %v1544 = vpop.f32.mrf.mxu0
  %v1545 = vadd.f32 0.0, %v1544
  %v1546 = vpop.f32.mrf.mxu0
  %v1547 = vpop.f32.mrf.mxu0
  %v1548 = vadd.f32 0.0, %v1547
  %v1549 = vpop.f32.mrf.mxu0
  %1550 = vdwg.mxu0
  %1551 = vst [vmem:[%s2 + $0x340] sm:$0xff] %v1545
  %1552 = vst [vmem:[%s2 + $0x348] sm:$0xff] %v1548
  // Predicated region
  $region10: #{_forward.1} parent=0 // pred_check
    _
  $region11: #{_forward.1} parent=0 // pred_check_branch
    %1554 = sbr.rel (0) target = $region13
  $region12: #{_forward.1} parent=0 // pred_region
    _
  $region13: #{_forward.1} parent=0 // pred_fallthru
    _
  // Predicated region
  $region14: #{_forward.1} parent=0 // pred_check
    _
  $region15: #{_forward.1} parent=0 // pred_check_branch
    %1556 = sbr.rel (0) target = $region17
  $region16: #{_forward.1} parent=0 // pred_region
    _
  $region17: #{_forward.1} parent=0 // pred_fallthru
    _

</llo_original>
